<compile_context>
chip_gen: v5e
topology: v5e:2x2
jax: 0.10.0
libtpu: 0.0.40
codegen_flags: <defaults>
</compile_context>

<pallas_src>
import jax
import jax.numpy as jnp
from jax.experimental import pallas as pl
from jax.experimental.pallas import tpu as pltpu


def fusion_kernel(x_ref, lg_ref, en_ref,
                  wx_ref, bx_ref,
                  wl_ref, bl_ref,
                  we_ref, be_ref,
                  wa_ref, ba_ref,
                  out_ref):
    # Projections: x / logits go through the MXU with f32 accumulation.
    xt = jnp.dot(x_ref[...], wx_ref[...],
                 preferred_element_type=jnp.float32) + bx_ref[...]
    lt = jnp.dot(lg_ref[...], wl_ref[...],
                 preferred_element_type=jnp.float32) + bl_ref[...]

    # Energy projection: energy_dim is typically 1, so a rank-1 matmul would
    # waste a full MXU push.  Do the outer product on the VPU instead.
    if en_ref.shape[-1] == 1:
        et = en_ref[...] * we_ref[...] + be_ref[...]          # (tm,1)*(1,D)
    else:
        et = jnp.dot(en_ref[...], we_ref[...],
                     preferred_element_type=jnp.float32) + be_ref[...]

    # Shared attention head: Linear(out_dim -> 1) + sigmoid, implemented as a
    # VPU multiply + lane reduce (XLU) + EUP sigmoid — no width-1 MXU matmul.
    wa = wa_ref[...]                                           # (1, out_dim)
    def attn(h):
        s = jnp.sum(h * wa, axis=-1, keepdims=True) + ba_ref[...]
        return jax.nn.sigmoid(s)                               # (tm, 1)

    xw = attn(xt)
    lw = attn(lt)
    ew = attn(et)

    # Factored normalization: one exact reciprocal, one full-width multiply
    # (matches PyTorch division semantics to within f32 rounding).
    inv_total = 1.0 / (xw + lw + ew)
    fused = (xw * xt + lw * lt + ew * et) * inv_total
    out_ref[...] = fused.astype(out_ref.dtype)


def attention_fusion(x, logits, energy, params, *, tm=2048):
    """x: (N, x_dim), logits: (N, logits_dim), energy: (N, energy_dim)."""
    N, x_dim = x.shape
    logits_dim = logits.shape[1]
    energy_dim = energy.shape[1]
    out_dim = params["wx"].shape[1]

    # Pick the row tile: large (amortize per-step pipeline overhead), multiple
    # of 8 sublanes, and <= ceil(N/2) so the parallel grid has >= 2 steps
    # (keeps both v7x TensorCores busy).  Pad N up to a multiple of the tile.
    half = -(-N // 2)
    tm_eff = max(8, min(tm, ((half + 7) // 8) * 8))
    n_pad = pl.cdiv(N, tm_eff) * tm_eff

    if n_pad != N:
        pad = n_pad - N
        x = jnp.pad(x, ((0, pad), (0, 0)))
        logits = jnp.pad(logits, ((0, pad), (0, 0)))
        energy = jnp.pad(energy, ((0, pad), (0, 0)))

    # Row-tiled specs for activations; weights/biases are full blocks pinned to
    # (0, 0) (constant block index => fetched once, resident across the grid).
    row_spec = lambda d: pl.BlockSpec((tm_eff, d), lambda i: (i, 0))
    full_spec = lambda shp: pl.BlockSpec(shp, lambda i: (0, 0))

    grid_spec = pltpu.PrefetchScalarGridSpec(
        num_scalar_prefetch=0,
        grid=(n_pad // tm_eff,),
        in_specs=[
            row_spec(x_dim),
            row_spec(logits_dim),
            row_spec(energy_dim),
            full_spec(params["wx"].shape), full_spec(params["bx"].shape),
            full_spec(params["wl"].shape), full_spec(params["bl"].shape),
            full_spec(params["we"].shape), full_spec(params["be"].shape),
            full_spec(params["wa"].shape), full_spec(params["ba"].shape),
        ],
        out_specs=row_spec(out_dim),
    )

    out = pl.pallas_call(
        fusion_kernel,
        out_shape=jax.ShapeDtypeStruct((n_pad, out_dim), jnp.float32),
        grid_spec=grid_spec,
        compiler_params=pltpu.CompilerParams(
            dimension_semantics=("parallel",)),
    )(x, logits, energy,
      params["wx"], params["bx"],
      params["wl"], params["bl"],
      params["we"], params["be"],
      params["wa"], params["ba"])

    return out[:N] if n_pad != N else out


def init_params(key, x_dim, logits_dim, energy_dim, output_dim):
    ks = jax.random.split(key, 8)

    def lin(kw, kb, fan_in, fan_out):
        # uniform(-1/sqrt(fan_in), 1/sqrt(fan_in)) like nn.Linear default
        bound = 1.0 / jnp.sqrt(fan_in)
        w = jax.random.uniform(kw, (fan_in, fan_out), jnp.float32, -bound, bound)
        b = jax.random.uniform(kb, (1, fan_out), jnp.float32, -bound, bound)
        return w, b

    wx, bx = lin(ks[0], ks[1], x_dim, output_dim)
    wl, bl = lin(ks[2], ks[3], logits_dim, output_dim)
    we, be = lin(ks[4], ks[5], energy_dim, output_dim)
    # Attention head Linear(output_dim -> 1): keep weight as a (1, output_dim)
    # row (PyTorch layout) for the in-kernel VPU multiply + lane reduce.
    bound = 1.0 / jnp.sqrt(output_dim)
    wa = jax.random.uniform(ks[6], (1, output_dim), jnp.float32, -bound, bound)
    ba = jax.random.uniform(ks[7], (1, 1), jnp.float32, -bound, bound)
    return dict(wx=wx, bx=bx, wl=wl, bl=bl, we=we, be=be, wa=wa, ba=ba)


def reference(x, logits, energy, p):
    """Pure-JAX mirror of the PyTorch forward (unfused, per-weight division)."""
    xt = x @ p["wx"] + p["bx"]
    lt = logits @ p["wl"] + p["bl"]
    et = energy @ p["we"] + p["be"]
    attn = lambda h: jax.nn.sigmoid(h @ p["wa"].T + p["ba"])
    xw, lw, ew = attn(xt), attn(lt), attn(et)
    tot = xw + lw + ew
    xw, lw, ew = xw / tot, lw / tot, ew / tot
    return xw * xt + lw * lt + ew * et


if __name__ == "__main__":
    # Small, non-multiple-of-tile N to exercise the padding path and a 2-step
    # parallel grid.
    N, x_dim, logits_dim, energy_dim, output_dim = 250, 32, 16, 1, 32

    key = jax.random.PRNGKey(0)
    k_x, k_l, k_e, k_p = jax.random.split(key, 4)
    x = jax.random.normal(k_x, (N, x_dim), jnp.float32)
    logits = jax.random.normal(k_l, (N, logits_dim), jnp.float32)
    energy = jax.random.normal(k_e, (N, energy_dim), jnp.float32)
    params = init_params(k_p, x_dim, logits_dim, energy_dim, output_dim)

    out = attention_fusion(x, logits, energy, params)
    out = jax.block_until_ready(out)

    ref = reference(x, logits, energy, params)
    assert out.shape == (N, output_dim)
    assert bool(jnp.allclose(out, ref, atol=2e-5, rtol=2e-5)), \
        "mismatch vs JAX reference"

    print("KERNEL_OK")
</pallas_src>

<mosaic_0001>
module attributes {stable_mosaic.version = 11 : i64} {
  func.func @fusion_kernel(%arg0: i32, %arg1: memref<128x32xf32, #tpu.memory_space<vmem>>, %arg2: memref<128x16xf32, #tpu.memory_space<vmem>>, %arg3: memref<128x1xf32, #tpu.memory_space<vmem>>, %arg4: memref<32x32xf32, #tpu.memory_space<vmem>>, %arg5: memref<1x32xf32, #tpu.memory_space<vmem>>, %arg6: memref<16x32xf32, #tpu.memory_space<vmem>>, %arg7: memref<1x32xf32, #tpu.memory_space<vmem>>, %arg8: memref<1x32xf32, #tpu.memory_space<vmem>>, %arg9: memref<1x32xf32, #tpu.memory_space<vmem>>, %arg10: memref<1x32xf32, #tpu.memory_space<vmem>>, %arg11: memref<1x1xf32, #tpu.memory_space<vmem>>, %arg12: memref<128x32xf32, #tpu.memory_space<vmem>>) attributes {dimension_semantics = [#tpu.dimension_semantics<parallel>], iteration_bounds = array<i64: 2>, scalar_prefetch = 0 : i64, scratch_operands = 0 : i64, tpu.core_type = #tpu.core_type<tc>, window_params = [{transform_indices = @transform_0, window_bounds = array<i64: 128, 32>}, {transform_indices = @transform_1, window_bounds = array<i64: 128, 16>}, {transform_indices = @transform_2, window_bounds = array<i64: 128, 1>}, {pipeline_mode = #tpu.pipeline_mode<synchronous>, transform_indices = @transform_3, window_bounds = array<i64: 32, 32>}, {pipeline_mode = #tpu.pipeline_mode<synchronous>, transform_indices = @transform_4, window_bounds = array<i64: 1, 32>}, {pipeline_mode = #tpu.pipeline_mode<synchronous>, transform_indices = @transform_5, window_bounds = array<i64: 16, 32>}, {pipeline_mode = #tpu.pipeline_mode<synchronous>, transform_indices = @transform_6, window_bounds = array<i64: 1, 32>}, {pipeline_mode = #tpu.pipeline_mode<synchronous>, transform_indices = @transform_7, window_bounds = array<i64: 1, 32>}, {pipeline_mode = #tpu.pipeline_mode<synchronous>, transform_indices = @transform_8, window_bounds = array<i64: 1, 32>}, {pipeline_mode = #tpu.pipeline_mode<synchronous>, transform_indices = @transform_9, window_bounds = array<i64: 1, 32>}, {pipeline_mode = #tpu.pipeline_mode<synchronous>, transform_indices = @transform_10, window_bounds = array<i64: 1, 1>}, {transform_indices = @transform_11, window_bounds = array<i64: 128, 32>}]} {
    %c0 = arith.constant 0 : index
    %c0_0 = arith.constant 0 : index
    %0 = vector.load %arg1[%c0, %c0_0] : memref<128x32xf32, #tpu.memory_space<vmem>>, vector<128x32xf32>
    %c0_1 = arith.constant 0 : index
    %c0_2 = arith.constant 0 : index
    %1 = vector.load %arg4[%c0_1, %c0_2] : memref<32x32xf32, #tpu.memory_space<vmem>>, vector<32x32xf32>
    %cst = arith.constant dense<0.000000e+00> : vector<128x32xf32>
    %2 = tpu.matmul %0, %1, %cst {dimension_numbers = #tpu.dot_dimension_numbers<[1], [0], [0], [1], [0, 0, 1, 1], [], []>} : vector<128x32xf32>, vector<32x32xf32>, vector<128x32xf32> -> vector<128x32xf32>
    %c0_3 = arith.constant 0 : index
    %c0_4 = arith.constant 0 : index
    %3 = vector.load %arg5[%c0_3, %c0_4] : memref<1x32xf32, #tpu.memory_space<vmem>>, vector<1x32xf32>
    %4 = vector.broadcast %3 : vector<1x32xf32> to vector<128x32xf32>
    %5 = arith.addf %2, %4 : vector<128x32xf32>
    %c0_5 = arith.constant 0 : index
    %c0_6 = arith.constant 0 : index
    %6 = vector.load %arg2[%c0_5, %c0_6] : memref<128x16xf32, #tpu.memory_space<vmem>>, vector<128x16xf32>
    %c0_7 = arith.constant 0 : index
    %c0_8 = arith.constant 0 : index
    %7 = vector.load %arg6[%c0_7, %c0_8] : memref<16x32xf32, #tpu.memory_space<vmem>>, vector<16x32xf32>
    %cst_9 = arith.constant dense<0.000000e+00> : vector<128x32xf32>
    %8 = tpu.matmul %6, %7, %cst_9 {dimension_numbers = #tpu.dot_dimension_numbers<[1], [0], [0], [1], [0, 0, 1, 1], [], []>} : vector<128x16xf32>, vector<16x32xf32>, vector<128x32xf32> -> vector<128x32xf32>
    %c0_10 = arith.constant 0 : index
    %c0_11 = arith.constant 0 : index
    %9 = vector.load %arg7[%c0_10, %c0_11] : memref<1x32xf32, #tpu.memory_space<vmem>>, vector<1x32xf32>
    %10 = vector.broadcast %9 : vector<1x32xf32> to vector<128x32xf32>
    %11 = arith.addf %8, %10 : vector<128x32xf32>
    %c0_12 = arith.constant 0 : index
    %c0_13 = arith.constant 0 : index
    %12 = vector.load %arg3[%c0_12, %c0_13] : memref<128x1xf32, #tpu.memory_space<vmem>>, vector<128x1xf32>
    %c0_14 = arith.constant 0 : index
    %c0_15 = arith.constant 0 : index
    %13 = vector.load %arg8[%c0_14, %c0_15] : memref<1x32xf32, #tpu.memory_space<vmem>>, vector<1x32xf32>
    %14 = vector.broadcast %12 : vector<128x1xf32> to vector<128x32xf32>
    %15 = vector.broadcast %13 : vector<1x32xf32> to vector<128x32xf32>
    %16 = arith.mulf %14, %15 : vector<128x32xf32>
    %c0_16 = arith.constant 0 : index
    %c0_17 = arith.constant 0 : index
    %17 = vector.load %arg9[%c0_16, %c0_17] : memref<1x32xf32, #tpu.memory_space<vmem>>, vector<1x32xf32>
    %18 = vector.broadcast %17 : vector<1x32xf32> to vector<128x32xf32>
    %19 = arith.addf %16, %18 : vector<128x32xf32>
    %c0_18 = arith.constant 0 : index
    %c0_19 = arith.constant 0 : index
    %20 = vector.load %arg10[%c0_18, %c0_19] : memref<1x32xf32, #tpu.memory_space<vmem>>, vector<1x32xf32>
    %21 = vector.broadcast %20 : vector<1x32xf32> to vector<128x32xf32>
    %22 = arith.mulf %5, %21 : vector<128x32xf32>
    %cst_20 = arith.constant dense<0.000000e+00> : vector<128xf32>
    %23 = vector.multi_reduction <add>, %22, %cst_20 [1] : vector<128x32xf32> to vector<128xf32>
    %24 = vector.shape_cast %23 : vector<128xf32> to vector<128x1xf32>
    %c0_21 = arith.constant 0 : index
    %c0_22 = arith.constant 0 : index
    %25 = vector.load %arg11[%c0_21, %c0_22] : memref<1x1xf32, #tpu.memory_space<vmem>>, vector<1x1xf32>
    %26 = vector.broadcast %25 : vector<1x1xf32> to vector<128x1xf32>
    %27 = arith.addf %24, %26 : vector<128x1xf32>
    %28 = arith.negf %27 : vector<128x1xf32>
    %29 = math.exp %28 : vector<128x1xf32>
    %cst_23 = arith.constant 1.000000e+00 : f32
    %30 = vector.broadcast %cst_23 : f32 to vector<128x1xf32>
    %31 = arith.addf %30, %29 : vector<128x1xf32>
    %32 = arith.divf %30, %31 : vector<128x1xf32>
    %33 = vector.broadcast %20 : vector<1x32xf32> to vector<128x32xf32>
    %34 = arith.mulf %11, %33 : vector<128x32xf32>
    %cst_24 = arith.constant dense<0.000000e+00> : vector<128xf32>
    %35 = vector.multi_reduction <add>, %34, %cst_24 [1] : vector<128x32xf32> to vector<128xf32>
    %36 = vector.shape_cast %35 : vector<128xf32> to vector<128x1xf32>
    %c0_25 = arith.constant 0 : index
    %c0_26 = arith.constant 0 : index
    %37 = vector.load %arg11[%c0_25, %c0_26] : memref<1x1xf32, #tpu.memory_space<vmem>>, vector<1x1xf32>
    %38 = vector.broadcast %37 : vector<1x1xf32> to vector<128x1xf32>
    %39 = arith.addf %36, %38 : vector<128x1xf32>
    %40 = arith.negf %39 : vector<128x1xf32>
    %41 = math.exp %40 : vector<128x1xf32>
    %cst_27 = arith.constant 1.000000e+00 : f32
    %42 = vector.broadcast %cst_27 : f32 to vector<128x1xf32>
    %43 = arith.addf %42, %41 : vector<128x1xf32>
    %44 = arith.divf %42, %43 : vector<128x1xf32>
    %45 = vector.broadcast %20 : vector<1x32xf32> to vector<128x32xf32>
    %46 = arith.mulf %19, %45 : vector<128x32xf32>
    %cst_28 = arith.constant dense<0.000000e+00> : vector<128xf32>
    %47 = vector.multi_reduction <add>, %46, %cst_28 [1] : vector<128x32xf32> to vector<128xf32>
    %48 = vector.shape_cast %47 : vector<128xf32> to vector<128x1xf32>
    %c0_29 = arith.constant 0 : index
    %c0_30 = arith.constant 0 : index
    %49 = vector.load %arg11[%c0_29, %c0_30] : memref<1x1xf32, #tpu.memory_space<vmem>>, vector<1x1xf32>
    %50 = vector.broadcast %49 : vector<1x1xf32> to vector<128x1xf32>
    %51 = arith.addf %48, %50 : vector<128x1xf32>
    %52 = arith.negf %51 : vector<128x1xf32>
    %53 = math.exp %52 : vector<128x1xf32>
    %cst_31 = arith.constant 1.000000e+00 : f32
    %54 = vector.broadcast %cst_31 : f32 to vector<128x1xf32>
    %55 = arith.addf %54, %53 : vector<128x1xf32>
    %56 = arith.divf %54, %55 : vector<128x1xf32>
    %57 = arith.addf %32, %44 : vector<128x1xf32>
    %58 = arith.addf %57, %56 : vector<128x1xf32>
    %cst_32 = arith.constant 1.000000e+00 : f32
    %59 = vector.broadcast %cst_32 : f32 to vector<128x1xf32>
    %60 = arith.divf %59, %58 : vector<128x1xf32>
    %61 = vector.broadcast %32 : vector<128x1xf32> to vector<128x32xf32>
    %62 = arith.mulf %61, %5 : vector<128x32xf32>
    %63 = vector.broadcast %44 : vector<128x1xf32> to vector<128x32xf32>
    %64 = arith.mulf %63, %11 : vector<128x32xf32>
    %65 = arith.addf %62, %64 : vector<128x32xf32>
    %66 = vector.broadcast %56 : vector<128x1xf32> to vector<128x32xf32>
    %67 = arith.mulf %66, %19 : vector<128x32xf32>
    %68 = arith.addf %65, %67 : vector<128x32xf32>
    %69 = vector.broadcast %60 : vector<128x1xf32> to vector<128x32xf32>
    %70 = arith.mulf %68, %69 : vector<128x32xf32>
    %c0_33 = arith.constant 0 : index
    %c0_34 = arith.constant 0 : index
    %71 = vector.load %arg12[%c0_33, %c0_34] : memref<128x32xf32, #tpu.memory_space<vmem>>, vector<128x32xf32>
    tpu.vector_store %arg12[%c0_33, %c0_34], %70 {strides = array<i32>} : memref<128x32xf32, #tpu.memory_space<vmem>>, vector<128x32xf32>,
    return
  }
  func.func @transform_0(%arg0: i32) -> (i32, i32) {
    %c0_i32 = arith.constant 0 : i32
    %c0_i32_0 = arith.constant 0 : i32
    return %arg0, %c0_i32 : i32, i32
  }
  func.func @transform_1(%arg0: i32) -> (i32, i32) {
    %c0_i32 = arith.constant 0 : i32
    %c0_i32_0 = arith.constant 0 : i32
    return %arg0, %c0_i32 : i32, i32
  }
  func.func @transform_2(%arg0: i32) -> (i32, i32) {
    %c0_i32 = arith.constant 0 : i32
    %c0_i32_0 = arith.constant 0 : i32
    return %arg0, %c0_i32 : i32, i32
  }
  func.func @transform_3(%arg0: i32) -> (i32, i32) {
    %c0_i32 = arith.constant 0 : i32
    %c0_i32_0 = arith.constant 0 : i32
    %c0_i32_1 = arith.constant 0 : i32
    return %c0_i32, %c0_i32_0 : i32, i32
  }
  func.func @transform_4(%arg0: i32) -> (i32, i32) {
    %c0_i32 = arith.constant 0 : i32
    %c0_i32_0 = arith.constant 0 : i32
    %c0_i32_1 = arith.constant 0 : i32
    return %c0_i32, %c0_i32_0 : i32, i32
  }
  func.func @transform_5(%arg0: i32) -> (i32, i32) {
    %c0_i32 = arith.constant 0 : i32
    %c0_i32_0 = arith.constant 0 : i32
    %c0_i32_1 = arith.constant 0 : i32
    return %c0_i32, %c0_i32_0 : i32, i32
  }
  func.func @transform_6(%arg0: i32) -> (i32, i32) {
    %c0_i32 = arith.constant 0 : i32
    %c0_i32_0 = arith.constant 0 : i32
    %c0_i32_1 = arith.constant 0 : i32
    return %c0_i32, %c0_i32_0 : i32, i32
  }
  func.func @transform_7(%arg0: i32) -> (i32, i32) {
    %c0_i32 = arith.constant 0 : i32
    %c0_i32_0 = arith.constant 0 : i32
    %c0_i32_1 = arith.constant 0 : i32
    return %c0_i32, %c0_i32_0 : i32, i32
  }
  func.func @transform_8(%arg0: i32) -> (i32, i32) {
    %c0_i32 = arith.constant 0 : i32
    %c0_i32_0 = arith.constant 0 : i32
    %c0_i32_1 = arith.constant 0 : i32
    return %c0_i32, %c0_i32_0 : i32, i32
  }
  func.func @transform_9(%arg0: i32) -> (i32, i32) {
    %c0_i32 = arith.constant 0 : i32
    %c0_i32_0 = arith.constant 0 : i32
    %c0_i32_1 = arith.constant 0 : i32
    return %c0_i32, %c0_i32_0 : i32, i32
  }
  func.func @transform_10(%arg0: i32) -> (i32, i32) {
    %c0_i32 = arith.constant 0 : i32
    %c0_i32_0 = arith.constant 0 : i32
    %c0_i32_1 = arith.constant 0 : i32
    return %c0_i32, %c0_i32_0 : i32, i32
  }
  func.func @transform_11(%arg0: i32) -> (i32, i32) {
    %c0_i32 = arith.constant 0 : i32
    %c0_i32_0 = arith.constant 0 : i32
    return %arg0, %c0_i32 : i32, i32
  }
}

</mosaic_0001>

<llo_original>
// kernel: tpu_custom_call.1
$region0: #{tpu_custom_call.1}
  #allocation0 [shape = 'u32[]', space=smem, size = 0x4, offset = 0x4, fixed_abs, tag = 'smem constant byte address 0x4 - core index']
  #allocation1 [shape = 'u32[72,128]{1,0:T(1,128)}', space=vmem, size = 0x9000, scoped, tag = 'internal scratch']
  #allocation2 [shape = 'f32[1,1]{1,0:T(1,128)S(1)}', space=vmem, size = 0x200, scoped, tag = 'scoped memory for tpu_custom_call.1']
  %s0 = inlined_call_operand.vmem [shape: f32[256,32], index: 0, kind: input, shape index: {}]
  %s1 = inlined_call_operand.vmem [shape: f32[256,16], index: 1, kind: input, shape index: {}]
  %s2 = inlined_call_operand.vmem [shape: f32[256,1], index: 2, kind: input, shape index: {}]
  %s3 = inlined_call_operand.vmem [shape: f32[32,32], index: 3, kind: input, shape index: {}]
  %s4 = inlined_call_operand.vmem [shape: f32[1,32], index: 4, kind: input, shape index: {}]
  %s5 = inlined_call_operand.vmem [shape: f32[16,32], index: 5, kind: input, shape index: {}]
  %s6 = inlined_call_operand.vmem [shape: f32[1,32], index: 6, kind: input, shape index: {}]
  %s7 = inlined_call_operand.vmem [shape: f32[1,32], index: 7, kind: input, shape index: {}]
  %s8 = inlined_call_operand.vmem [shape: f32[1,32], index: 8, kind: input, shape index: {}]
  %s9 = inlined_call_operand.vmem [shape: f32[1,32], index: 9, kind: input, shape index: {}]
  %s10 = inlined_call_operand.<no memory space> [shape: f32[1,1], index: 10, kind: input, shape index: {}]
  %s11 = inlined_call_operand.vmem [shape: f32[256,32], index: 11, kind: output, shape index: {}]
  %s12 = sld [smem:[#allocation0]]
  $region77: #{tpu_custom_call.1} parent=0
    _
  %s14 = ssub.s32 1, %s12
  %s15 = scalar_select 0, %s14, %s12
  %v16 = vstv %s10
  %17 = vst [vmem:[#allocation2] sm:$0x1] %v16
  loop: start=0, step=1, limit=4
  $region2: #{tpu_custom_call.1} parent=0 // loop_pre_header
    _
  $region3: #{tpu_custom_call.1} parent=0 // loop_header
    %s19 = sphi 0, %s23
    %p20 = scmp.ge.s32.totalorder %s19, 4
    %s29 = sphi 0, %s31
    %s32 = sphi 0, %s29
    %s33 = sphi 0, %s32
    %s49 = sphi 0, %s33
    %s55 = sphi 0, %s57
    %s58 = sphi 0, %s55
    %s59 = sphi 0, %s58
    %s75 = sphi 0, %s59
    %s81 = sphi 0, %s83
    %s84 = sphi 0, %s81
    %s85 = sphi 0, %s84
    %s101 = sphi 0, %s85
    %s105 = sphi 0, %s105
    %s107 = sphi 0, %s105
    %s108 = sphi 0, %s107
    %s122 = sphi 0, %s108
    %s126 = sphi 0, %s126
    %s128 = sphi 0, %s126
    %s129 = sphi 0, %s128
    %s143 = sphi 0, %s129
    %s147 = sphi 0, %s147
    %s149 = sphi 0, %s147
    %s150 = sphi 0, %s149
    %s164 = sphi 0, %s150
    %s168 = sphi 0, %s168
    %s170 = sphi 0, %s168
    %s171 = sphi 0, %s170
    %s185 = sphi 0, %s171
    %s189 = sphi 0, %s189
    %s191 = sphi 0, %s189
    %s192 = sphi 0, %s191
    %s206 = sphi 0, %s192
    %s210 = sphi 0, %s210
    %s212 = sphi 0, %s210
    %s213 = sphi 0, %s212
    %s227 = sphi 0, %s213
    %s231 = sphi 0, %s231
    %s233 = sphi 0, %s231
    %s234 = sphi 0, %s233
    %s248 = sphi 0, %s234
    %s252 = sphi 0, %s252
    %s254 = sphi 0, %s252
    %s255 = sphi 0, %s254
    %s269 = sphi 0, %s255
    %s275 = sphi 0, %s277
    %s278 = sphi 0, %s275
    %s279 = sphi 0, %s278
    %s295 = sphi 0, %s279
  $region4: #{tpu_custom_call.1} parent=0 // loop_header_branch
    %22 = sbr.rel (%p20) target = $region8
  $region5: #{tpu_custom_call.1} parent=0 // loop_body
    %s24 = ssub.s32 %s19, 1
    %s25 = ssub.s32 %s19, 2
    %s26 = sadd.s32 %s19, 1
    %s27 = ssub.s32 %s19, %s26
    %p28 = scmp.eq.s32.totalorder %s27, 0
    %s30 = sadd.s32 %s29, 1
    %s31 = scalar_select %p28, %s29, %s30
    %p34 = pneg %p28
    %p35 = scmp.eq.s32.totalorder %s19, 1
    %p36 = por %p34, %p35
    %p37 = scmp.ne.s32.totalorder %s29, %s32
    %p38 = scmp.eq.s32.totalorder %s19, 0
    %p39 = por %p37, %p38
    %p40 = scmp.ne.s32.totalorder %s29, %s32
    %p41 = scmp.eq.s32.totalorder %s24, 1
    %p42 = por %p40, %p41
    %p43 = scmp.ne.s32.totalorder %s32, %s33
    %p44 = scmp.eq.s32.totalorder %s24, 0
    %p45 = por %p43, %p44
    %p46 = scmp.ne.s32.totalorder %s32, %s33
    %p47 = scmp.eq.s32.totalorder %s25, 1
    %p48 = por %p46, %p47
    %p50 = scmp.ne.s32.totalorder %s33, %s49
    %p51 = scmp.eq.s32.totalorder %s25, 0
    %p52 = por %p50, %p51
    %s53 = ssub.s32 %s19, %s26
    %p54 = scmp.eq.s32.totalorder %s53, 0
    %s56 = sadd.s32 %s55, 1
    %s57 = scalar_select %p54, %s55, %s56
    %p60 = pneg %p54
    %p61 = scmp.eq.s32.totalorder %s19, 1
    %p62 = por %p60, %p61
    %p63 = scmp.ne.s32.totalorder %s55, %s58
    %p64 = scmp.eq.s32.totalorder %s19, 0
    %p65 = por %p63, %p64
    %p66 = scmp.ne.s32.totalorder %s55, %s58
    %p67 = scmp.eq.s32.totalorder %s24, 1
    %p68 = por %p66, %p67
    %p69 = scmp.ne.s32.totalorder %s58, %s59
    %p70 = scmp.eq.s32.totalorder %s24, 0
    %p71 = por %p69, %p70
    %p72 = scmp.ne.s32.totalorder %s58, %s59
    %p73 = scmp.eq.s32.totalorder %s25, 1
    %p74 = por %p72, %p73
    %p76 = scmp.ne.s32.totalorder %s59, %s75
    %p77 = scmp.eq.s32.totalorder %s25, 0
    %p78 = por %p76, %p77
    %s79 = ssub.s32 %s19, %s26
    %p80 = scmp.eq.s32.totalorder %s79, 0
    %s82 = sadd.s32 %s81, 1
    %s83 = scalar_select %p80, %s81, %s82
    %p86 = pneg %p80
    %p87 = scmp.eq.s32.totalorder %s19, 1
    %p88 = por %p86, %p87
    %p89 = scmp.ne.s32.totalorder %s81, %s84
    %p90 = scmp.eq.s32.totalorder %s19, 0
    %p91 = por %p89, %p90
    %p92 = scmp.ne.s32.totalorder %s81, %s84
    %p93 = scmp.eq.s32.totalorder %s24, 1
    %p94 = por %p92, %p93
    %p95 = scmp.ne.s32.totalorder %s84, %s85
    %p96 = scmp.eq.s32.totalorder %s24, 0
    %p97 = por %p95, %p96
    %p98 = scmp.ne.s32.totalorder %s84, %s85
    %p99 = scmp.eq.s32.totalorder %s25, 1
    %p100 = por %p98, %p99
    %p102 = scmp.ne.s32.totalorder %s85, %s101
    %p103 = scmp.eq.s32.totalorder %s25, 0
    %p104 = por %p102, %p103
    %s106 = sadd.s32 %s105, 1
    %p109 = scmp.eq.s32.totalorder %s19, 1
    %p110 = scmp.ne.s32.totalorder %s105, %s107
    %p111 = scmp.eq.s32.totalorder %s19, 0
    %p112 = por %p110, %p111
    %p113 = scmp.ne.s32.totalorder %s105, %s107
    %p114 = scmp.eq.s32.totalorder %s24, 1
    %p115 = por %p113, %p114
    %p116 = scmp.ne.s32.totalorder %s107, %s108
    %p117 = scmp.eq.s32.totalorder %s24, 0
    %p118 = por %p116, %p117
    %p119 = scmp.ne.s32.totalorder %s107, %s108
    %p120 = scmp.eq.s32.totalorder %s25, 1
    %p121 = por %p119, %p120
    %p123 = scmp.ne.s32.totalorder %s108, %s122
    %p124 = scmp.eq.s32.totalorder %s25, 0
    %p125 = por %p123, %p124
    %s127 = sadd.s32 %s126, 1
    %p130 = scmp.eq.s32.totalorder %s19, 1
    %p131 = scmp.ne.s32.totalorder %s126, %s128
    %p132 = scmp.eq.s32.totalorder %s19, 0
    %p133 = por %p131, %p132
    %p134 = scmp.ne.s32.totalorder %s126, %s128
    %p135 = scmp.eq.s32.totalorder %s24, 1
    %p136 = por %p134, %p135
    %p137 = scmp.ne.s32.totalorder %s128, %s129
    %p138 = scmp.eq.s32.totalorder %s24, 0
    %p139 = por %p137, %p138
    %p140 = scmp.ne.s32.totalorder %s128, %s129
    %p141 = scmp.eq.s32.totalorder %s25, 1
    %p142 = por %p140, %p141
    %p144 = scmp.ne.s32.totalorder %s129, %s143
    %p145 = scmp.eq.s32.totalorder %s25, 0
    %p146 = por %p144, %p145
    %s148 = sadd.s32 %s147, 1
    %p151 = scmp.eq.s32.totalorder %s19, 1
    %p152 = scmp.ne.s32.totalorder %s147, %s149
    %p153 = scmp.eq.s32.totalorder %s19, 0
    %p154 = por %p152, %p153
    %p155 = scmp.ne.s32.totalorder %s147, %s149
    %p156 = scmp.eq.s32.totalorder %s24, 1
    %p157 = por %p155, %p156
    %p158 = scmp.ne.s32.totalorder %s149, %s150
    %p159 = scmp.eq.s32.totalorder %s24, 0
    %p160 = por %p158, %p159
    %p161 = scmp.ne.s32.totalorder %s149, %s150
    %p162 = scmp.eq.s32.totalorder %s25, 1
    %p163 = por %p161, %p162
    %p165 = scmp.ne.s32.totalorder %s150, %s164
    %p166 = scmp.eq.s32.totalorder %s25, 0
    %p167 = por %p165, %p166
    %s169 = sadd.s32 %s168, 1
    %p172 = scmp.eq.s32.totalorder %s19, 1
    %p173 = scmp.ne.s32.totalorder %s168, %s170
    %p174 = scmp.eq.s32.totalorder %s19, 0
    %p175 = por %p173, %p174
    %p176 = scmp.ne.s32.totalorder %s168, %s170
    %p177 = scmp.eq.s32.totalorder %s24, 1
    %p178 = por %p176, %p177
    %p179 = scmp.ne.s32.totalorder %s170, %s171
    %p180 = scmp.eq.s32.totalorder %s24, 0
    %p181 = por %p179, %p180
    %p182 = scmp.ne.s32.totalorder %s170, %s171
    %p183 = scmp.eq.s32.totalorder %s25, 1
    %p184 = por %p182, %p183
    %p186 = scmp.ne.s32.totalorder %s171, %s185
    %p187 = scmp.eq.s32.totalorder %s25, 0
    %p188 = por %p186, %p187
    %s190 = sadd.s32 %s189, 1
    %p193 = scmp.eq.s32.totalorder %s19, 1
    %p194 = scmp.ne.s32.totalorder %s189, %s191
    %p195 = scmp.eq.s32.totalorder %s19, 0
    %p196 = por %p194, %p195
    %p197 = scmp.ne.s32.totalorder %s189, %s191
    %p198 = scmp.eq.s32.totalorder %s24, 1
    %p199 = por %p197, %p198
    %p200 = scmp.ne.s32.totalorder %s191, %s192
    %p201 = scmp.eq.s32.totalorder %s24, 0
    %p202 = por %p200, %p201
    %p203 = scmp.ne.s32.totalorder %s191, %s192
    %p204 = scmp.eq.s32.totalorder %s25, 1
    %p205 = por %p203, %p204
    %p207 = scmp.ne.s32.totalorder %s192, %s206
    %p208 = scmp.eq.s32.totalorder %s25, 0
    %p209 = por %p207, %p208
    %s211 = sadd.s32 %s210, 1
    %p214 = scmp.eq.s32.totalorder %s19, 1
    %p215 = scmp.ne.s32.totalorder %s210, %s212
    %p216 = scmp.eq.s32.totalorder %s19, 0
    %p217 = por %p215, %p216
    %p218 = scmp.ne.s32.totalorder %s210, %s212
    %p219 = scmp.eq.s32.totalorder %s24, 1
    %p220 = por %p218, %p219
    %p221 = scmp.ne.s32.totalorder %s212, %s213
    %p222 = scmp.eq.s32.totalorder %s24, 0
    %p223 = por %p221, %p222
    %p224 = scmp.ne.s32.totalorder %s212, %s213
    %p225 = scmp.eq.s32.totalorder %s25, 1
    %p226 = por %p224, %p225
    %p228 = scmp.ne.s32.totalorder %s213, %s227
    %p229 = scmp.eq.s32.totalorder %s25, 0
    %p230 = por %p228, %p229
    %s232 = sadd.s32 %s231, 1
    %p235 = scmp.eq.s32.totalorder %s19, 1
    %p236 = scmp.ne.s32.totalorder %s231, %s233
    %p237 = scmp.eq.s32.totalorder %s19, 0
    %p238 = por %p236, %p237
    %p239 = scmp.ne.s32.totalorder %s231, %s233
    %p240 = scmp.eq.s32.totalorder %s24, 1
    %p241 = por %p239, %p240
    %p242 = scmp.ne.s32.totalorder %s233, %s234
    %p243 = scmp.eq.s32.totalorder %s24, 0
    %p244 = por %p242, %p243
    %p245 = scmp.ne.s32.totalorder %s233, %s234
    %p246 = scmp.eq.s32.totalorder %s25, 1
    %p247 = por %p245, %p246
    %p249 = scmp.ne.s32.totalorder %s234, %s248
    %p250 = scmp.eq.s32.totalorder %s25, 0
    %p251 = por %p249, %p250
    %s253 = sadd.s32 %s252, 1
    %p256 = scmp.eq.s32.totalorder %s19, 1
    %p257 = scmp.ne.s32.totalorder %s252, %s254
    %p258 = scmp.eq.s32.totalorder %s19, 0
    %p259 = por %p257, %p258
    %p260 = scmp.ne.s32.totalorder %s252, %s254
    %p261 = scmp.eq.s32.totalorder %s24, 1
    %p262 = por %p260, %p261
    %p263 = scmp.ne.s32.totalorder %s254, %s255
    %p264 = scmp.eq.s32.totalorder %s24, 0
    %p265 = por %p263, %p264
    %p266 = scmp.ne.s32.totalorder %s254, %s255
    %p267 = scmp.eq.s32.totalorder %s25, 1
    %p268 = por %p266, %p267
    %p270 = scmp.ne.s32.totalorder %s255, %s269
    %p271 = scmp.eq.s32.totalorder %s25, 0
    %p272 = por %p270, %p271
    %s273 = ssub.s32 %s19, %s26
    %p274 = scmp.eq.s32.totalorder %s273, 0
    %s276 = sadd.s32 %s275, 1
    %s277 = scalar_select %p274, %s275, %s276
    %p280 = pneg %p274
    %p281 = scmp.eq.s32.totalorder %s19, 1
    %p282 = por %p280, %p281
    %p283 = scmp.ne.s32.totalorder %s275, %s278
    %p284 = scmp.eq.s32.totalorder %s19, 0
    %p285 = por %p283, %p284
    %p286 = scmp.ne.s32.totalorder %s275, %s278
    %p287 = scmp.eq.s32.totalorder %s24, 1
    %p288 = por %p286, %p287
    %p289 = scmp.ne.s32.totalorder %s278, %s279
    %p290 = scmp.eq.s32.totalorder %s24, 0
    %p291 = por %p289, %p290
    %p292 = scmp.ne.s32.totalorder %s278, %s279
    %p293 = scmp.eq.s32.totalorder %s25, 1
    %p294 = por %p292, %p293
    %p296 = scmp.ne.s32.totalorder %s279, %s295
    %p297 = scmp.eq.s32.totalorder %s25, 0
    %p298 = por %p296, %p297
    %p299 = scmp.le.s32.totalorder 1, %s19
    %p300 = scmp.lt.s32.totalorder %s19, 3
    %p301 = pnand %p299, %p300
    %p302 = pneg %p301
    // Predicated region
    $region9: #{tpu_custom_call.1} parent=5 // pred_check
      _
    $region10: #{tpu_custom_call.1} parent=5 // pred_check_branch
      %304 = sbr.rel (%p301) target = $region12
    $region11: #{tpu_custom_call.1} parent=5 // pred_region
      %s305 = ssub.s32 %s19, 1
      // Predicated region
      $region13: #{tpu_custom_call.1} parent=11 // pred_check
        %p306 = pneg %p118
      $region14: #{tpu_custom_call.1} parent=11 // pred_check_branch
        %308 = sbr.rel (%p306) target = $region16
      $region15: #{tpu_custom_call.1} parent=11 // pred_region
        _
      $region16: #{tpu_custom_call.1} parent=11 // pred_fallthru
        _
      // Predicated region
      $region17: #{tpu_custom_call.1} parent=11 // pred_check
        %p309 = pneg %p139
      $region18: #{tpu_custom_call.1} parent=11 // pred_check_branch
        %311 = sbr.rel (%p309) target = $region20
      $region19: #{tpu_custom_call.1} parent=11 // pred_region
        _
      $region20: #{tpu_custom_call.1} parent=11 // pred_fallthru
        _
      // Predicated region
      $region21: #{tpu_custom_call.1} parent=11 // pred_check
        %p312 = pneg %p160
      $region22: #{tpu_custom_call.1} parent=11 // pred_check_branch
        %314 = sbr.rel (%p312) target = $region24
      $region23: #{tpu_custom_call.1} parent=11 // pred_region
        _
      $region24: #{tpu_custom_call.1} parent=11 // pred_fallthru
        _
      // Predicated region
      $region25: #{tpu_custom_call.1} parent=11 // pred_check
        %p315 = pneg %p181
      $region26: #{tpu_custom_call.1} parent=11 // pred_check_branch
        %317 = sbr.rel (%p315) target = $region28
      $region27: #{tpu_custom_call.1} parent=11 // pred_region
        _
      $region28: #{tpu_custom_call.1} parent=11 // pred_fallthru
        _
      // Predicated region
      $region29: #{tpu_custom_call.1} parent=11 // pred_check
        %p318 = pneg %p202
      $region30: #{tpu_custom_call.1} parent=11 // pred_check_branch
        %320 = sbr.rel (%p318) target = $region32
      $region31: #{tpu_custom_call.1} parent=11 // pred_region
        _
      $region32: #{tpu_custom_call.1} parent=11 // pred_fallthru
        _
      // Predicated region
      $region33: #{tpu_custom_call.1} parent=11 // pred_check
        %p321 = pneg %p223
      $region34: #{tpu_custom_call.1} parent=11 // pred_check_branch
        %323 = sbr.rel (%p321) target = $region36
      $region35: #{tpu_custom_call.1} parent=11 // pred_region
        _
      $region36: #{tpu_custom_call.1} parent=11 // pred_fallthru
        _
      // Predicated region
      $region37: #{tpu_custom_call.1} parent=11 // pred_check
        %p324 = pneg %p244
      $region38: #{tpu_custom_call.1} parent=11 // pred_check_branch
        %326 = sbr.rel (%p324) target = $region40
      $region39: #{tpu_custom_call.1} parent=11 // pred_region
        _
      $region40: #{tpu_custom_call.1} parent=11 // pred_fallthru
        _
      // Predicated region
      $region41: #{tpu_custom_call.1} parent=11 // pred_check
        %p327 = pneg %p265
      $region42: #{tpu_custom_call.1} parent=11 // pred_check_branch
        %329 = sbr.rel (%p327) target = $region44
      $region43: #{tpu_custom_call.1} parent=11 // pred_region
        _
      $region44: #{tpu_custom_call.1} parent=11 // pred_fallthru
        _
    $region12: #{tpu_custom_call.1} parent=5 // pred_fallthru
      _
    %p330 = scmp.lt.s32.totalorder %s19, 2
    // Predicated region
    $region45: #{tpu_custom_call.1} parent=5 // pred_check
      %p331 = pneg %p330
    $region46: #{tpu_custom_call.1} parent=5 // pred_check_branch
      %333 = sbr.rel (%p331) target = $region48
    $region47: #{tpu_custom_call.1} parent=5 // pred_region
      // Predicated region
      $region49: #{tpu_custom_call.1} parent=47 // pred_check
        %p334 = pneg %p39
      $region50: #{tpu_custom_call.1} parent=47 // pred_check_branch
        %336 = sbr.rel (%p334) target = $region52
      $region51: #{tpu_custom_call.1} parent=47 // pred_region
        %s337 = smul.u32 16, %s19
        %p338 = scmp.lt.s32.totalorder %s337, 31
        %s339 = scalar_select %p338, %s337, 31
        %s340 = smul.addr %s339, 8
        %s341 = scalar_lea.vmem %s0, %s340
        %s342 = smul.u32 16, %s19
      $region52: #{tpu_custom_call.1} parent=47 // pred_fallthru
        _
      // Predicated region
      $region53: #{tpu_custom_call.1} parent=47 // pred_check
        %p343 = pneg %p65
      $region54: #{tpu_custom_call.1} parent=47 // pred_check_branch
        %345 = sbr.rel (%p343) target = $region56
      $region55: #{tpu_custom_call.1} parent=47 // pred_region
        %s346 = smul.u32 16, %s19
        %p347 = scmp.lt.s32.totalorder %s346, 31
        %s348 = scalar_select %p347, %s346, 31
        %s349 = smul.addr %s348, 8
        %s350 = scalar_lea.vmem %s1, %s349
        %s351 = smul.u32 16, %s19
      $region56: #{tpu_custom_call.1} parent=47 // pred_fallthru
        _
      // Predicated region
      $region57: #{tpu_custom_call.1} parent=47 // pred_check
        %p352 = pneg %p91
      $region58: #{tpu_custom_call.1} parent=47 // pred_check_branch
        %354 = sbr.rel (%p352) target = $region60
      $region59: #{tpu_custom_call.1} parent=47 // pred_region
        %s355 = smul.u32 16, %s19
        %p356 = scmp.lt.s32.totalorder %s355, 31
        %s357 = scalar_select %p356, %s355, 31
        %s358 = smul.addr %s357, 8
        %s359 = scalar_lea.vmem %s2, %s358
        %s360 = smul.u32 16, %s19
      $region60: #{tpu_custom_call.1} parent=47 // pred_fallthru
        _
    $region48: #{tpu_custom_call.1} parent=5 // pred_fallthru
      _
    %p361 = scmp.le.s32.totalorder 1, %s19
    %p362 = scmp.lt.s32.totalorder %s19, 3
    %p363 = pnand %p361, %p362
    %p364 = pneg %p363
    // Predicated region
    $region61: #{tpu_custom_call.1} parent=5 // pred_check
      _
    $region62: #{tpu_custom_call.1} parent=5 // pred_check_branch
      %366 = sbr.rel (%p363) target = $region64
    $region63: #{tpu_custom_call.1} parent=5 // pred_region
      %s367 = ssub.s32 %s19, 1
      %s368 = smul.u32 16, %s24
      %p369 = scmp.lt.s32.totalorder %s368, 31
      %s370 = scalar_select %p369, %s368, 31
      %s371 = smul.addr %s370, 8
      %s372 = scalar_lea.vmem %s0, %s371
      %p373 = pneg %p45
      %p374 = pneg %p42
      %s375 = smul.u32 16, %s24
      %p376 = scmp.lt.s32.totalorder %s375, 31
      %s377 = scalar_select %p376, %s375, 31
      %s378 = smul.addr %s377, 8
      %s379 = scalar_lea.vmem %s1, %s378
      %p380 = pneg %p71
      %p381 = pneg %p68
      %s382 = smul.u32 16, %s24
      %p383 = scmp.lt.s32.totalorder %s382, 31
      %s384 = scalar_select %p383, %s382, 31
      %s385 = smul.addr %s384, 8
      %s386 = scalar_lea.vmem %s2, %s385
      %p387 = pneg %p97
      %p388 = pneg %p94
      %p389 = pneg %p118
      %p390 = pneg %p115
      %p391 = pneg %p139
      %p392 = pneg %p136
      %p393 = pneg %p160
      %p394 = pneg %p157
      %p395 = pneg %p181
      %p396 = pneg %p178
      %p397 = pneg %p202
      %p398 = pneg %p199
      %p399 = pneg %p223
      %p400 = pneg %p220
      %p401 = pneg %p244
      %p402 = pneg %p241
      %p403 = pneg %p265
      %p404 = pneg %p262
      %p405 = pneg %p291
      %p406 = pneg %p288
      %s407 = smul.u32 16, %s24
      %p408 = scmp.lt.s32.totalorder %s407, 31
      %s409 = scalar_select %p408, %s407, 31
      %s410 = smul.addr %s409, 8
      %s411 = scalar_lea.vmem %s11, %s410
      %s412 = smul.u32 16, %s24
      %p413 = scmp.lt.s32.totalorder %s412, 31
      %s414 = scalar_select %p413, %s412, 31
      %s415 = smul.addr %s414, 8
      %s416 = scalar_lea.vmem %s0, %s415
      %s417 = smul.u32 16, %s24
      %s418 = smul.u32 16, %s24
      %p419 = scmp.lt.s32.totalorder %s418, 31
      %s420 = scalar_select %p419, %s418, 31
      %s421 = smul.addr %s420, 8
      %s422 = scalar_lea.vmem %s1, %s421
      %s423 = smul.u32 16, %s24
      %s424 = smul.u32 16, %s24
      %p425 = scmp.lt.s32.totalorder %s424, 31
      %s426 = scalar_select %p425, %s424, 31
      %s427 = smul.addr %s426, 8
      %s428 = scalar_lea.vmem %s2, %s427
      %s429 = smul.u32 16, %s24
      %s430 = smul.u32 16, %s24
      %p431 = scmp.lt.s32.totalorder %s430, 31
      %s432 = scalar_select %p431, %s430, 31
      %s433 = smul.addr %s432, 8
      %s434 = scalar_lea.vmem %s11, %s433
      %s435 = smul.u32 16, %s24
      %v436 = vld [vmem:[%s416] sm:$0xff]
      %v437 = vld [vmem:[%s416 + $0x8] sm:$0xff]
      %v438 = vld [vmem:[%s416 + $0x10] sm:$0xff]
      %v439 = vld [vmem:[%s416 + $0x18] sm:$0xff]
      %v440 = vld [vmem:[%s416 + $0x20] sm:$0xff]
      %v441 = vld [vmem:[%s416 + $0x28] sm:$0xff]
      %v442 = vld [vmem:[%s416 + $0x30] sm:$0xff]
      %v443 = vld [vmem:[%s416 + $0x38] sm:$0xff]
      %v444 = vld [vmem:[%s416 + $0x40] sm:$0xff]
      %v445 = vld [vmem:[%s416 + $0x48] sm:$0xff]
      %v446 = vld [vmem:[%s416 + $0x50] sm:$0xff]
      %v447 = vld [vmem:[%s416 + $0x58] sm:$0xff]
      %v448 = vld [vmem:[%s416 + $0x60] sm:$0xff]
      %v449 = vld [vmem:[%s416 + $0x68] sm:$0xff]
      %v450 = vld [vmem:[%s416 + $0x70] sm:$0xff]
      %v451 = vld [vmem:[%s416 + $0x78] sm:$0xff]
      %v452 = vld [vmem:[%s3] sm:$0xff]
      %v453 = vld [vmem:[%s3 + $0x8] sm:$0xff]
      %v454 = vld [vmem:[%s3 + $0x10] sm:$0xff]
      %v455 = vld [vmem:[%s3 + $0x18] sm:$0xff]
      %v456 = vld [vmem:[%s4] sm:$0x1]
      %v458 = vperm.slane %v456, 0
      %vm460 = vcmask 261120
      %v462 = vsel %vm460, %v436, 0
      %v465 = vsel %vm460, %v437, 0
      %v468 = vsel %vm460, %v438, 0
      %v471 = vsel %vm460, %v439, 0
      %v474 = vsel %vm460, %v440, 0
      %v477 = vsel %vm460, %v441, 0
      %v480 = vsel %vm460, %v442, 0
      %v483 = vsel %vm460, %v443, 0
      %v486 = vsel %vm460, %v444, 0
      %v489 = vsel %vm460, %v445, 0
      %v492 = vsel %vm460, %v446, 0
      %v495 = vsel %vm460, %v447, 0
      %v498 = vsel %vm460, %v448, 0
      %v501 = vsel %vm460, %v449, 0
      %v504 = vsel %vm460, %v450, 0
      %v507 = vsel %vm460, %v451, 0
      %509 = vmatpush.msra.mxu0 0.0
      %510 = vmatpush.msra.mxu0 0.0
      %511 = vmatpush.msra.mxu0 0.0
      %512 = vmatpush.msra.mxu0 0.0
      %513 = vmatpush.msra.mxu0 0.0
      %514 = vmatpush.msra.mxu0 0.0
      %515 = vmatpush.msra.mxu0 0.0
      %516 = vmatpush.msra.mxu0 0.0
      %517 = vmatpush.msra.mxu0 0.0
      %518 = vmatpush.msra.mxu0 0.0
      %519 = vmatpush.msra.mxu0 0.0
      %520 = vmatpush.msra.mxu0 0.0
      %521 = vmatpush.msra.mxu0 %v455
      %522 = vmatpush.msra.mxu0 %v454
      %523 = vmatpush.msra.mxu0 %v453
      %524 = vmatpush.msra.mxu0 %v452
      %525 = vmatmul.f32.gmra.mxu0 %v462
      %v526 = vpop.f32.mrf.mxu0
      %v527 = vadd.f32 %v458, %v526
      %528 = vmatmul.f32.gmra.mxu0 %v465
      %v529 = vpop.f32.mrf.mxu0
      %v530 = vadd.f32 %v458, %v529
      %531 = vmatmul.f32.gmra.mxu0 %v468
      %v532 = vpop.f32.mrf.mxu0
      %v533 = vadd.f32 %v458, %v532
      %534 = vmatmul.f32.gmra.mxu0 %v471
      %v535 = vpop.f32.mrf.mxu0
      %v536 = vadd.f32 %v458, %v535
      %537 = vmatmul.f32.gmra.mxu0 %v474
      %v538 = vpop.f32.mrf.mxu0
      %v539 = vadd.f32 %v458, %v538
      %540 = vmatmul.f32.gmra.mxu0 %v477
      %v541 = vpop.f32.mrf.mxu0
      %v542 = vadd.f32 %v458, %v541
      %543 = vmatmul.f32.gmra.mxu0 %v480
      %v544 = vpop.f32.mrf.mxu0
      %v545 = vadd.f32 %v458, %v544
      %546 = vmatmul.f32.gmra.mxu0 %v483
      %v547 = vpop.f32.mrf.mxu0
      %v548 = vadd.f32 %v458, %v547
      %549 = vmatmul.f32.gmra.mxu0 %v486
      %v550 = vpop.f32.mrf.mxu0
      %v551 = vadd.f32 %v458, %v550
      %552 = vmatmul.f32.gmra.mxu0 %v489
      %v553 = vpop.f32.mrf.mxu0
      %v554 = vadd.f32 %v458, %v553
      %555 = vmatmul.f32.gmra.mxu0 %v492
      %v556 = vpop.f32.mrf.mxu0
      %v557 = vadd.f32 %v458, %v556
      %558 = vmatmul.f32.gmra.mxu0 %v495
      %v559 = vpop.f32.mrf.mxu0
      %v560 = vadd.f32 %v458, %v559
      %561 = vmatmul.f32.gmra.mxu0 %v498
      %v562 = vpop.f32.mrf.mxu0
      %v563 = vadd.f32 %v458, %v562
      %564 = vmatmul.f32.gmra.mxu0 %v501
      %v565 = vpop.f32.mrf.mxu0
      %v566 = vadd.f32 %v458, %v565
      %567 = vmatmul.f32.gmra.mxu0 %v504
      %v568 = vpop.f32.mrf.mxu0
      %v569 = vadd.f32 %v458, %v568
      %570 = vmatmul.f32.gmra.mxu0 %v507
      %v571 = vpop.f32.mrf.mxu0
      %v572 = vadd.f32 %v458, %v571
      %573 = vdwg.mxu0
      %v574 = vld [vmem:[%s422] sm:$0xff]
      %v575 = vld [vmem:[%s422 + $0x8] sm:$0xff]
      %v576 = vld [vmem:[%s422 + $0x10] sm:$0xff]
      %v577 = vld [vmem:[%s422 + $0x18] sm:$0xff]
      %v578 = vld [vmem:[%s422 + $0x20] sm:$0xff]
      %v579 = vld [vmem:[%s422 + $0x28] sm:$0xff]
      %v580 = vld [vmem:[%s422 + $0x30] sm:$0xff]
      %v581 = vld [vmem:[%s422 + $0x38] sm:$0xff]
      %v582 = vld [vmem:[%s422 + $0x40] sm:$0xff]
      %v583 = vld [vmem:[%s422 + $0x48] sm:$0xff]
      %v584 = vld [vmem:[%s422 + $0x50] sm:$0xff]
      %v585 = vld [vmem:[%s422 + $0x58] sm:$0xff]
      %v586 = vld [vmem:[%s422 + $0x60] sm:$0xff]
      %v587 = vld [vmem:[%s422 + $0x68] sm:$0xff]
      %v588 = vld [vmem:[%s422 + $0x70] sm:$0xff]
      %v589 = vld [vmem:[%s422 + $0x78] sm:$0xff]
      %v590 = vld [vmem:[%s5] sm:$0xff]
      %v591 = vld [vmem:[%s5 + $0x8] sm:$0xff]
      %v592 = vld [vmem:[%s6] sm:$0x1]
      %v594 = vperm.slane %v592, 0
      %vm596 = vcmask 130048
      %v598 = vsel %vm596, %v574, 0
      %v601 = vsel %vm596, %v575, 0
      %v604 = vsel %vm596, %v576, 0
      %v607 = vsel %vm596, %v577, 0
      %v610 = vsel %vm596, %v578, 0
      %v613 = vsel %vm596, %v579, 0
      %v616 = vsel %vm596, %v580, 0
      %v619 = vsel %vm596, %v581, 0
      %v622 = vsel %vm596, %v582, 0
      %v625 = vsel %vm596, %v583, 0
      %v628 = vsel %vm596, %v584, 0
      %v631 = vsel %vm596, %v585, 0
      %v634 = vsel %vm596, %v586, 0
      %v637 = vsel %vm596, %v587, 0
      %v640 = vsel %vm596, %v588, 0
      %v643 = vsel %vm596, %v589, 0
      %645 = vmatpush.msra.mxu0 0.0
      %646 = vmatpush.msra.mxu0 0.0
      %647 = vmatpush.msra.mxu0 0.0
      %648 = vmatpush.msra.mxu0 0.0
      %649 = vmatpush.msra.mxu0 0.0
      %650 = vmatpush.msra.mxu0 0.0
      %651 = vmatpush.msra.mxu0 0.0
      %652 = vmatpush.msra.mxu0 0.0
      %653 = vmatpush.msra.mxu0 0.0
      %654 = vmatpush.msra.mxu0 0.0
      %655 = vmatpush.msra.mxu0 0.0
      %656 = vmatpush.msra.mxu0 0.0
      %657 = vmatpush.msra.mxu0 0.0
      %658 = vmatpush.msra.mxu0 0.0
      %659 = vmatpush.msra.mxu0 %v591
      %660 = vmatpush.msra.mxu0 %v590
      %661 = vmatmul.f32.gmra.mxu0 %v598
      %v662 = vpop.f32.mrf.mxu0
      %v663 = vadd.f32 %v594, %v662
      %664 = vmatmul.f32.gmra.mxu0 %v601
      %v665 = vpop.f32.mrf.mxu0
      %v666 = vadd.f32 %v594, %v665
      %667 = vmatmul.f32.gmra.mxu0 %v604
      %v668 = vpop.f32.mrf.mxu0
      %v669 = vadd.f32 %v594, %v668
      %670 = vmatmul.f32.gmra.mxu0 %v607
      %v671 = vpop.f32.mrf.mxu0
      %v672 = vadd.f32 %v594, %v671
      %673 = vmatmul.f32.gmra.mxu0 %v610
      %v674 = vpop.f32.mrf.mxu0
      %v675 = vadd.f32 %v594, %v674
      %676 = vmatmul.f32.gmra.mxu0 %v613
      %v677 = vpop.f32.mrf.mxu0
      %v678 = vadd.f32 %v594, %v677
      %679 = vmatmul.f32.gmra.mxu0 %v616
      %v680 = vpop.f32.mrf.mxu0
      %v681 = vadd.f32 %v594, %v680
      %682 = vmatmul.f32.gmra.mxu0 %v619
      %v683 = vpop.f32.mrf.mxu0
      %v684 = vadd.f32 %v594, %v683
      %685 = vmatmul.f32.gmra.mxu0 %v622
      %v686 = vpop.f32.mrf.mxu0
      %v687 = vadd.f32 %v594, %v686
      %688 = vmatmul.f32.gmra.mxu0 %v625
      %v689 = vpop.f32.mrf.mxu0
      %v690 = vadd.f32 %v594, %v689
      %691 = vmatmul.f32.gmra.mxu0 %v628
      %v692 = vpop.f32.mrf.mxu0
      %v693 = vadd.f32 %v594, %v692
      %694 = vmatmul.f32.gmra.mxu0 %v631
      %v695 = vpop.f32.mrf.mxu0
      %v696 = vadd.f32 %v594, %v695
      %697 = vmatmul.f32.gmra.mxu0 %v634
      %v698 = vpop.f32.mrf.mxu0
      %v699 = vadd.f32 %v594, %v698
      %700 = vmatmul.f32.gmra.mxu0 %v637
      %v701 = vpop.f32.mrf.mxu0
      %v702 = vadd.f32 %v594, %v701
      %703 = vmatmul.f32.gmra.mxu0 %v640
      %v704 = vpop.f32.mrf.mxu0
      %v705 = vadd.f32 %v594, %v704
      %706 = vmatmul.f32.gmra.mxu0 %v643
      %v707 = vpop.f32.mrf.mxu0
      %v708 = vadd.f32 %v594, %v707
      %709 = vdwg.mxu0
      %v710 = vld [vmem:[%s428] sm:$0xff]
      %v711 = vld [vmem:[%s428 + $0x8] sm:$0xff]
      %v712 = vld [vmem:[%s428 + $0x10] sm:$0xff]
      %v713 = vld [vmem:[%s428 + $0x18] sm:$0xff]
      %v714 = vld [vmem:[%s428 + $0x20] sm:$0xff]
      %v715 = vld [vmem:[%s428 + $0x28] sm:$0xff]
      %v716 = vld [vmem:[%s428 + $0x30] sm:$0xff]
      %v717 = vld [vmem:[%s428 + $0x38] sm:$0xff]
      %v718 = vld [vmem:[%s428 + $0x40] sm:$0xff]
      %v719 = vld [vmem:[%s428 + $0x48] sm:$0xff]
      %v720 = vld [vmem:[%s428 + $0x50] sm:$0xff]
      %v721 = vld [vmem:[%s428 + $0x58] sm:$0xff]
      %v722 = vld [vmem:[%s428 + $0x60] sm:$0xff]
      %v723 = vld [vmem:[%s428 + $0x68] sm:$0xff]
      %v724 = vld [vmem:[%s428 + $0x70] sm:$0xff]
      %v725 = vld [vmem:[%s428 + $0x78] sm:$0xff]
      %v726 = vld [vmem:[%s7] sm:$0x1]
      %728 = vset.pattern.permute.xlu0 0
      %729 = vperm.xlu0 %728, %v710
      %v730 = vpop.permute.xlu0 %729
      %733 = vset.pattern.permute.xlu0 0
      %734 = vperm.xlu0 %733, %v711
      %v735 = vpop.permute.xlu0 %734
      %738 = vset.pattern.permute.xlu0 0
      %739 = vperm.xlu0 %738, %v712
      %v740 = vpop.permute.xlu0 %739
      %743 = vset.pattern.permute.xlu0 0
      %744 = vperm.xlu0 %743, %v713
      %v745 = vpop.permute.xlu0 %744
      %748 = vset.pattern.permute.xlu0 0
      %749 = vperm.xlu0 %748, %v714
      %v750 = vpop.permute.xlu0 %749
      %753 = vset.pattern.permute.xlu0 0
      %754 = vperm.xlu0 %753, %v715
      %v755 = vpop.permute.xlu0 %754
      %758 = vset.pattern.permute.xlu0 0
      %759 = vperm.xlu0 %758, %v716
      %v760 = vpop.permute.xlu0 %759
      %763 = vset.pattern.permute.xlu0 0
      %764 = vperm.xlu0 %763, %v717
      %v765 = vpop.permute.xlu0 %764
      %768 = vset.pattern.permute.xlu0 0
      %769 = vperm.xlu0 %768, %v718
      %v770 = vpop.permute.xlu0 %769
      %773 = vset.pattern.permute.xlu0 0
      %774 = vperm.xlu0 %773, %v719
      %v775 = vpop.permute.xlu0 %774
      %778 = vset.pattern.permute.xlu0 0
      %779 = vperm.xlu0 %778, %v720
      %v780 = vpop.permute.xlu0 %779
      %783 = vset.pattern.permute.xlu0 0
      %784 = vperm.xlu0 %783, %v721
      %v785 = vpop.permute.xlu0 %784
      %788 = vset.pattern.permute.xlu0 0
      %789 = vperm.xlu0 %788, %v722
      %v790 = vpop.permute.xlu0 %789
      %793 = vset.pattern.permute.xlu0 0
      %794 = vperm.xlu0 %793, %v723
      %v795 = vpop.permute.xlu0 %794
      %798 = vset.pattern.permute.xlu0 0
      %799 = vperm.xlu0 %798, %v724
      %v800 = vpop.permute.xlu0 %799
      %803 = vset.pattern.permute.xlu0 0
      %804 = vperm.xlu0 %803, %v725
      %v805 = vpop.permute.xlu0 %804
      %v808 = vperm.slane %v726, 0
      %v810 = vmul.f32 %v730, %v808
      %v811 = vmul.f32 %v735, %v808
      %v812 = vmul.f32 %v740, %v808
      %v813 = vmul.f32 %v745, %v808
      %v814 = vmul.f32 %v750, %v808
      %v815 = vmul.f32 %v755, %v808
      %v816 = vmul.f32 %v760, %v808
      %v817 = vmul.f32 %v765, %v808
      %v818 = vmul.f32 %v770, %v808
      %v819 = vmul.f32 %v775, %v808
      %v820 = vmul.f32 %v780, %v808
      %v821 = vmul.f32 %v785, %v808
      %v822 = vmul.f32 %v790, %v808
      %v823 = vmul.f32 %v795, %v808
      %v824 = vmul.f32 %v800, %v808
      %v825 = vmul.f32 %v805, %v808
      %v826 = vld [vmem:[%s8] sm:$0x1]
      %v828 = vperm.slane %v826, 0
      %v830 = vadd.f32 %v810, %v828
      %v831 = vadd.f32 %v811, %v828
      %v832 = vadd.f32 %v812, %v828
      %v833 = vadd.f32 %v813, %v828
      %v834 = vadd.f32 %v814, %v828
      %v835 = vadd.f32 %v815, %v828
      %v836 = vadd.f32 %v816, %v828
      %v837 = vadd.f32 %v817, %v828
      %v838 = vadd.f32 %v818, %v828
      %v839 = vadd.f32 %v819, %v828
      %v840 = vadd.f32 %v820, %v828
      %v841 = vadd.f32 %v821, %v828
      %v842 = vadd.f32 %v822, %v828
      %v843 = vadd.f32 %v823, %v828
      %v844 = vadd.f32 %v824, %v828
      %v845 = vadd.f32 %v825, %v828
      %v846 = vld [vmem:[%s9] sm:$0x1]
      %v848 = vperm.slane %v846, 0
      %v850 = vmul.f32 %v527, %v848
      %v851 = vmul.f32 %v530, %v848
      %v852 = vmul.f32 %v533, %v848
      %v853 = vmul.f32 %v536, %v848
      %v854 = vmul.f32 %v539, %v848
      %v855 = vmul.f32 %v542, %v848
      %v856 = vmul.f32 %v545, %v848
      %v857 = vmul.f32 %v548, %v848
      %v858 = vmul.f32 %v551, %v848
      %v859 = vmul.f32 %v554, %v848
      %v860 = vmul.f32 %v557, %v848
      %v861 = vmul.f32 %v560, %v848
      %v862 = vmul.f32 %v563, %v848
      %v863 = vmul.f32 %v566, %v848
      %v864 = vmul.f32 %v569, %v848
      %v865 = vmul.f32 %v572, %v848
      %v866 = vsel %vm460, %v850, 0.0
      %867 = vadd.xlane.f32.xlu0 %v866
      %v868 = vpop.xlane.xlu0 %867
      %v869 = vsel %vm460, %v851, 0.0
      %870 = vadd.xlane.f32.xlu0 %v869
      %v871 = vpop.xlane.xlu0 %870
      %v872 = vsel %vm460, %v852, 0.0
      %873 = vadd.xlane.f32.xlu0 %v872
      %v874 = vpop.xlane.xlu0 %873
      %v875 = vsel %vm460, %v853, 0.0
      %876 = vadd.xlane.f32.xlu0 %v875
      %v877 = vpop.xlane.xlu0 %876
      %v878 = vsel %vm460, %v854, 0.0
      %879 = vadd.xlane.f32.xlu0 %v878
      %v880 = vpop.xlane.xlu0 %879
      %v881 = vsel %vm460, %v855, 0.0
      %882 = vadd.xlane.f32.xlu0 %v881
      %v883 = vpop.xlane.xlu0 %882
      %v884 = vsel %vm460, %v856, 0.0
      %885 = vadd.xlane.f32.xlu0 %v884
      %v886 = vpop.xlane.xlu0 %885
      %v887 = vsel %vm460, %v857, 0.0
      %888 = vadd.xlane.f32.xlu0 %v887
      %v889 = vpop.xlane.xlu0 %888
      %v890 = vsel %vm460, %v858, 0.0
      %891 = vadd.xlane.f32.xlu0 %v890
      %v892 = vpop.xlane.xlu0 %891
      %v893 = vsel %vm460, %v859, 0.0
      %894 = vadd.xlane.f32.xlu0 %v893
      %v895 = vpop.xlane.xlu0 %894
      %v896 = vsel %vm460, %v860, 0.0
      %897 = vadd.xlane.f32.xlu0 %v896
      %v898 = vpop.xlane.xlu0 %897
      %v899 = vsel %vm460, %v861, 0.0
      %900 = vadd.xlane.f32.xlu0 %v899
      %v901 = vpop.xlane.xlu0 %900
      %v902 = vsel %vm460, %v862, 0.0
      %903 = vadd.xlane.f32.xlu0 %v902
      %v904 = vpop.xlane.xlu0 %903
      %v905 = vsel %vm460, %v863, 0.0
      %906 = vadd.xlane.f32.xlu0 %v905
      %v907 = vpop.xlane.xlu0 %906
      %v908 = vsel %vm460, %v864, 0.0
      %909 = vadd.xlane.f32.xlu0 %v908
      %v910 = vpop.xlane.xlu0 %909
      %v911 = vsel %vm460, %v865, 0.0
      %912 = vadd.xlane.f32.xlu0 %v911
      %v913 = vpop.xlane.xlu0 %912
      %v914 = vld [vmem:[#allocation2] sm:$0x1]
      %v916 = vperm.slane %v914, 0
      %v918 = vadd.f32 %v868, %v916
      %v919 = vadd.f32 %v871, %v916
      %v920 = vadd.f32 %v874, %v916
      %v921 = vadd.f32 %v877, %v916
      %v922 = vadd.f32 %v880, %v916
      %v923 = vadd.f32 %v883, %v916
      %v924 = vadd.f32 %v886, %v916
      %v925 = vadd.f32 %v889, %v916
      %v926 = vadd.f32 %v892, %v916
      %v927 = vadd.f32 %v895, %v916
      %v928 = vadd.f32 %v898, %v916
      %v929 = vadd.f32 %v901, %v916
      %v930 = vadd.f32 %v904, %v916
      %v931 = vadd.f32 %v907, %v916
      %v932 = vadd.f32 %v910, %v916
      %v933 = vadd.f32 %v913, %v916
      %v934 = vxor.u32 %v918, 2147483648
      %v935 = vxor.u32 %v919, 2147483648
      %v936 = vxor.u32 %v920, 2147483648
      %v937 = vxor.u32 %v921, 2147483648
      %v938 = vxor.u32 %v922, 2147483648
      %v939 = vxor.u32 %v923, 2147483648
      %v940 = vxor.u32 %v924, 2147483648
      %v941 = vxor.u32 %v925, 2147483648
      %v942 = vxor.u32 %v926, 2147483648
      %v943 = vxor.u32 %v927, 2147483648
      %v944 = vxor.u32 %v928, 2147483648
      %v945 = vxor.u32 %v929, 2147483648
      %v946 = vxor.u32 %v930, 2147483648
      %v947 = vxor.u32 %v931, 2147483648
      %v948 = vxor.u32 %v932, 2147483648
      %v949 = vxor.u32 %v933, 2147483648
      %v950 = vmul.f32 %v934, 1.442695
      %v951 = vpow.pop %v950
      %v952 = vmul.f32 %v935, 1.442695
      %v953 = vpow.pop %v952
      %v954 = vmul.f32 %v936, 1.442695
      %v955 = vpow.pop %v954
      %v956 = vmul.f32 %v937, 1.442695
      %v957 = vpow.pop %v956
      %v958 = vmul.f32 %v938, 1.442695
      %v959 = vpow.pop %v958
      %v960 = vmul.f32 %v939, 1.442695
      %v961 = vpow.pop %v960
      %v962 = vmul.f32 %v940, 1.442695
      %v963 = vpow.pop %v962
      %v964 = vmul.f32 %v941, 1.442695
      %v965 = vpow.pop %v964
      %v966 = vmul.f32 %v942, 1.442695
      %v967 = vpow.pop %v966
      %v968 = vmul.f32 %v943, 1.442695
      %v969 = vpow.pop %v968
      %v970 = vmul.f32 %v944, 1.442695
      %v971 = vpow.pop %v970
      %v972 = vmul.f32 %v945, 1.442695
      %v973 = vpow.pop %v972
      %v974 = vmul.f32 %v946, 1.442695
      %v975 = vpow.pop %v974
      %v976 = vmul.f32 %v947, 1.442695
      %v977 = vpow.pop %v976
      %v978 = vmul.f32 %v948, 1.442695
      %v979 = vpow.pop %v978
      %v980 = vmul.f32 %v949, 1.442695
      %v981 = vpow.pop %v980
      %v982 = vadd.f32 %v951, 1.0
      %v983 = vadd.f32 %v953, 1.0
      %v984 = vadd.f32 %v955, 1.0
      %v985 = vadd.f32 %v957, 1.0
      %v986 = vadd.f32 %v959, 1.0
      %v987 = vadd.f32 %v961, 1.0
      %v988 = vadd.f32 %v963, 1.0
      %v989 = vadd.f32 %v965, 1.0
      %v990 = vadd.f32 %v967, 1.0
      %v991 = vadd.f32 %v969, 1.0
      %v992 = vadd.f32 %v971, 1.0
      %v993 = vadd.f32 %v973, 1.0
      %v994 = vadd.f32 %v975, 1.0
      %v995 = vadd.f32 %v977, 1.0
      %v996 = vadd.f32 %v979, 1.0
      %v997 = vadd.f32 %v981, 1.0
      %v998 = vrcp.pop %v982
      %v999 = vmul.f32 %v982, %v998
      %v1000 = vsub.f32 1.0, %v999
      %v1001 = vmul.f32 %v998, %v1000
      %v1002 = vadd.f32 %v998, %v1001
      %vm1003 = vweird.f32 %v982
      %vm1004 = vweird.f32 %v998
      %vm1005 = vmor %vm1003, %vm1004
      %v1006 = vsel %vm1005, %v998, %v1002
      %v1007 = vand.u32 2147483647, %v982
      %vm1008 = vcmp.eq.f32.partialorder %v1007, 8.507059e+37
      %v1009 = vand.u32 %v982, 2147483648
      %v1010 = vor.u32 1.1754944e-38, %v1009
      %v1011 = vsel %vm1008, %v1010, %v1006
      %v1012 = vmul.f32 1.0, %v1011
      %v1013 = vrcp.pop %v983
      %v1014 = vmul.f32 %v983, %v1013
      %v1015 = vsub.f32 1.0, %v1014
      %v1016 = vmul.f32 %v1013, %v1015
      %v1017 = vadd.f32 %v1013, %v1016
      %vm1018 = vweird.f32 %v983
      %vm1019 = vweird.f32 %v1013
      %vm1020 = vmor %vm1018, %vm1019
      %v1021 = vsel %vm1020, %v1013, %v1017
      %v1022 = vand.u32 2147483647, %v983
      %vm1023 = vcmp.eq.f32.partialorder %v1022, 8.507059e+37
      %v1024 = vand.u32 %v983, 2147483648
      %v1025 = vor.u32 1.1754944e-38, %v1024
      %v1026 = vsel %vm1023, %v1025, %v1021
      %v1027 = vmul.f32 1.0, %v1026
      %v1028 = vrcp.pop %v984
      %v1029 = vmul.f32 %v984, %v1028
      %v1030 = vsub.f32 1.0, %v1029
      %v1031 = vmul.f32 %v1028, %v1030
      %v1032 = vadd.f32 %v1028, %v1031
      %vm1033 = vweird.f32 %v984
      %vm1034 = vweird.f32 %v1028
      %vm1035 = vmor %vm1033, %vm1034
      %v1036 = vsel %vm1035, %v1028, %v1032
      %v1037 = vand.u32 2147483647, %v984
      %vm1038 = vcmp.eq.f32.partialorder %v1037, 8.507059e+37
      %v1039 = vand.u32 %v984, 2147483648
      %v1040 = vor.u32 1.1754944e-38, %v1039
      %v1041 = vsel %vm1038, %v1040, %v1036
      %v1042 = vmul.f32 1.0, %v1041
      %v1043 = vrcp.pop %v985
      %v1044 = vmul.f32 %v985, %v1043
      %v1045 = vsub.f32 1.0, %v1044
      %v1046 = vmul.f32 %v1043, %v1045
      %v1047 = vadd.f32 %v1043, %v1046
      %vm1048 = vweird.f32 %v985
      %vm1049 = vweird.f32 %v1043
      %vm1050 = vmor %vm1048, %vm1049
      %v1051 = vsel %vm1050, %v1043, %v1047
      %v1052 = vand.u32 2147483647, %v985
      %vm1053 = vcmp.eq.f32.partialorder %v1052, 8.507059e+37
      %v1054 = vand.u32 %v985, 2147483648
      %v1055 = vor.u32 1.1754944e-38, %v1054
      %v1056 = vsel %vm1053, %v1055, %v1051
      %v1057 = vmul.f32 1.0, %v1056
      %v1058 = vrcp.pop %v986
      %v1059 = vmul.f32 %v986, %v1058
      %v1060 = vsub.f32 1.0, %v1059
      %v1061 = vmul.f32 %v1058, %v1060
      %v1062 = vadd.f32 %v1058, %v1061
      %vm1063 = vweird.f32 %v986
      %vm1064 = vweird.f32 %v1058
      %vm1065 = vmor %vm1063, %vm1064
      %v1066 = vsel %vm1065, %v1058, %v1062
      %v1067 = vand.u32 2147483647, %v986
      %vm1068 = vcmp.eq.f32.partialorder %v1067, 8.507059e+37
      %v1069 = vand.u32 %v986, 2147483648
      %v1070 = vor.u32 1.1754944e-38, %v1069
      %v1071 = vsel %vm1068, %v1070, %v1066
      %v1072 = vmul.f32 1.0, %v1071
      %v1073 = vrcp.pop %v987
      %v1074 = vmul.f32 %v987, %v1073
      %v1075 = vsub.f32 1.0, %v1074
      %v1076 = vmul.f32 %v1073, %v1075
      %v1077 = vadd.f32 %v1073, %v1076
      %vm1078 = vweird.f32 %v987
      %vm1079 = vweird.f32 %v1073
      %vm1080 = vmor %vm1078, %vm1079
      %v1081 = vsel %vm1080, %v1073, %v1077
      %v1082 = vand.u32 2147483647, %v987
      %vm1083 = vcmp.eq.f32.partialorder %v1082, 8.507059e+37
      %v1084 = vand.u32 %v987, 2147483648
      %v1085 = vor.u32 1.1754944e-38, %v1084
      %v1086 = vsel %vm1083, %v1085, %v1081
      %v1087 = vmul.f32 1.0, %v1086
      %v1088 = vrcp.pop %v988
      %v1089 = vmul.f32 %v988, %v1088
      %v1090 = vsub.f32 1.0, %v1089
      %v1091 = vmul.f32 %v1088, %v1090
      %v1092 = vadd.f32 %v1088, %v1091
      %vm1093 = vweird.f32 %v988
      %vm1094 = vweird.f32 %v1088
      %vm1095 = vmor %vm1093, %vm1094
      %v1096 = vsel %vm1095, %v1088, %v1092
      %v1097 = vand.u32 2147483647, %v988
      %vm1098 = vcmp.eq.f32.partialorder %v1097, 8.507059e+37
      %v1099 = vand.u32 %v988, 2147483648
      %v1100 = vor.u32 1.1754944e-38, %v1099
      %v1101 = vsel %vm1098, %v1100, %v1096
      %v1102 = vmul.f32 1.0, %v1101
      %v1103 = vrcp.pop %v989
      %v1104 = vmul.f32 %v989, %v1103
      %v1105 = vsub.f32 1.0, %v1104
      %v1106 = vmul.f32 %v1103, %v1105
      %v1107 = vadd.f32 %v1103, %v1106
      %vm1108 = vweird.f32 %v989
      %vm1109 = vweird.f32 %v1103
      %vm1110 = vmor %vm1108, %vm1109
      %v1111 = vsel %vm1110, %v1103, %v1107
      %v1112 = vand.u32 2147483647, %v989
      %vm1113 = vcmp.eq.f32.partialorder %v1112, 8.507059e+37
      %v1114 = vand.u32 %v989, 2147483648
      %v1115 = vor.u32 1.1754944e-38, %v1114
      %v1116 = vsel %vm1113, %v1115, %v1111
      %v1117 = vmul.f32 1.0, %v1116
      %v1118 = vrcp.pop %v990
      %v1119 = vmul.f32 %v990, %v1118
      %v1120 = vsub.f32 1.0, %v1119
      %v1121 = vmul.f32 %v1118, %v1120
      %v1122 = vadd.f32 %v1118, %v1121
      %vm1123 = vweird.f32 %v990
      %vm1124 = vweird.f32 %v1118
      %vm1125 = vmor %vm1123, %vm1124
      %v1126 = vsel %vm1125, %v1118, %v1122
      %v1127 = vand.u32 2147483647, %v990
      %vm1128 = vcmp.eq.f32.partialorder %v1127, 8.507059e+37
      %v1129 = vand.u32 %v990, 2147483648
      %v1130 = vor.u32 1.1754944e-38, %v1129
      %v1131 = vsel %vm1128, %v1130, %v1126
      %v1132 = vmul.f32 1.0, %v1131
      %v1133 = vrcp.pop %v991
      %v1134 = vmul.f32 %v991, %v1133
      %v1135 = vsub.f32 1.0, %v1134
      %v1136 = vmul.f32 %v1133, %v1135
      %v1137 = vadd.f32 %v1133, %v1136
      %vm1138 = vweird.f32 %v991
      %vm1139 = vweird.f32 %v1133
      %vm1140 = vmor %vm1138, %vm1139
      %v1141 = vsel %vm1140, %v1133, %v1137
      %v1142 = vand.u32 2147483647, %v991
      %vm1143 = vcmp.eq.f32.partialorder %v1142, 8.507059e+37
      %v1144 = vand.u32 %v991, 2147483648
      %v1145 = vor.u32 1.1754944e-38, %v1144
      %v1146 = vsel %vm1143, %v1145, %v1141
      %v1147 = vmul.f32 1.0, %v1146
      %v1148 = vrcp.pop %v992
      %v1149 = vmul.f32 %v992, %v1148
      %v1150 = vsub.f32 1.0, %v1149
      %v1151 = vmul.f32 %v1148, %v1150
      %v1152 = vadd.f32 %v1148, %v1151
      %vm1153 = vweird.f32 %v992
      %vm1154 = vweird.f32 %v1148
      %vm1155 = vmor %vm1153, %vm1154
      %v1156 = vsel %vm1155, %v1148, %v1152
      %v1157 = vand.u32 2147483647, %v992
      %vm1158 = vcmp.eq.f32.partialorder %v1157, 8.507059e+37
      %v1159 = vand.u32 %v992, 2147483648
      %v1160 = vor.u32 1.1754944e-38, %v1159
      %v1161 = vsel %vm1158, %v1160, %v1156
      %v1162 = vmul.f32 1.0, %v1161
      %v1163 = vrcp.pop %v993
      %v1164 = vmul.f32 %v993, %v1163
      %v1165 = vsub.f32 1.0, %v1164
      %v1166 = vmul.f32 %v1163, %v1165
      %v1167 = vadd.f32 %v1163, %v1166
      %vm1168 = vweird.f32 %v993
      %vm1169 = vweird.f32 %v1163
      %vm1170 = vmor %vm1168, %vm1169
      %v1171 = vsel %vm1170, %v1163, %v1167
      %v1172 = vand.u32 2147483647, %v993
      %vm1173 = vcmp.eq.f32.partialorder %v1172, 8.507059e+37
      %v1174 = vand.u32 %v993, 2147483648
      %v1175 = vor.u32 1.1754944e-38, %v1174
      %v1176 = vsel %vm1173, %v1175, %v1171
      %v1177 = vmul.f32 1.0, %v1176
      %v1178 = vrcp.pop %v994
      %v1179 = vmul.f32 %v994, %v1178
      %v1180 = vsub.f32 1.0, %v1179
      %v1181 = vmul.f32 %v1178, %v1180
      %v1182 = vadd.f32 %v1178, %v1181
      %vm1183 = vweird.f32 %v994
      %vm1184 = vweird.f32 %v1178
      %vm1185 = vmor %vm1183, %vm1184
      %v1186 = vsel %vm1185, %v1178, %v1182
      %v1187 = vand.u32 2147483647, %v994
      %vm1188 = vcmp.eq.f32.partialorder %v1187, 8.507059e+37
      %v1189 = vand.u32 %v994, 2147483648
      %v1190 = vor.u32 1.1754944e-38, %v1189
      %v1191 = vsel %vm1188, %v1190, %v1186
      %v1192 = vmul.f32 1.0, %v1191
      %v1193 = vrcp.pop %v995
      %v1194 = vmul.f32 %v995, %v1193
      %v1195 = vsub.f32 1.0, %v1194
      %v1196 = vmul.f32 %v1193, %v1195
      %v1197 = vadd.f32 %v1193, %v1196
      %vm1198 = vweird.f32 %v995
      %vm1199 = vweird.f32 %v1193
      %vm1200 = vmor %vm1198, %vm1199
      %v1201 = vsel %vm1200, %v1193, %v1197
      %v1202 = vand.u32 2147483647, %v995
      %vm1203 = vcmp.eq.f32.partialorder %v1202, 8.507059e+37
      %v1204 = vand.u32 %v995, 2147483648
      %v1205 = vor.u32 1.1754944e-38, %v1204
      %v1206 = vsel %vm1203, %v1205, %v1201
      %v1207 = vmul.f32 1.0, %v1206
      %v1208 = vrcp.pop %v996
      %v1209 = vmul.f32 %v996, %v1208
      %v1210 = vsub.f32 1.0, %v1209
      %v1211 = vmul.f32 %v1208, %v1210
      %v1212 = vadd.f32 %v1208, %v1211
      %vm1213 = vweird.f32 %v996
      %vm1214 = vweird.f32 %v1208
      %vm1215 = vmor %vm1213, %vm1214
      %v1216 = vsel %vm1215, %v1208, %v1212
      %v1217 = vand.u32 2147483647, %v996
      %vm1218 = vcmp.eq.f32.partialorder %v1217, 8.507059e+37
      %v1219 = vand.u32 %v996, 2147483648
      %v1220 = vor.u32 1.1754944e-38, %v1219
      %v1221 = vsel %vm1218, %v1220, %v1216
      %v1222 = vmul.f32 1.0, %v1221
      %v1223 = vrcp.pop %v997
      %v1224 = vmul.f32 %v997, %v1223
      %v1225 = vsub.f32 1.0, %v1224
      %v1226 = vmul.f32 %v1223, %v1225
      %v1227 = vadd.f32 %v1223, %v1226
      %vm1228 = vweird.f32 %v997
      %vm1229 = vweird.f32 %v1223
      %vm1230 = vmor %vm1228, %vm1229
      %v1231 = vsel %vm1230, %v1223, %v1227
      %v1232 = vand.u32 2147483647, %v997
      %vm1233 = vcmp.eq.f32.partialorder %v1232, 8.507059e+37
      %v1234 = vand.u32 %v997, 2147483648
      %v1235 = vor.u32 1.1754944e-38, %v1234
      %v1236 = vsel %vm1233, %v1235, %v1231
      %v1237 = vmul.f32 1.0, %v1236
      %v1238 = vmul.f32 %v663, %v848
      %v1239 = vmul.f32 %v666, %v848
      %v1240 = vmul.f32 %v669, %v848
      %v1241 = vmul.f32 %v672, %v848
      %v1242 = vmul.f32 %v675, %v848
      %v1243 = vmul.f32 %v678, %v848
      %v1244 = vmul.f32 %v681, %v848
      %v1245 = vmul.f32 %v684, %v848
      %v1246 = vmul.f32 %v687, %v848
      %v1247 = vmul.f32 %v690, %v848
      %v1248 = vmul.f32 %v693, %v848
      %v1249 = vmul.f32 %v696, %v848
      %v1250 = vmul.f32 %v699, %v848
      %v1251 = vmul.f32 %v702, %v848
      %v1252 = vmul.f32 %v705, %v848
      %v1253 = vmul.f32 %v708, %v848
      %v1254 = vsel %vm460, %v1238, 0.0
      %1255 = vadd.xlane.f32.xlu0 %v1254
      %v1256 = vpop.xlane.xlu0 %1255
      %v1257 = vsel %vm460, %v1239, 0.0
      %1258 = vadd.xlane.f32.xlu0 %v1257
      %v1259 = vpop.xlane.xlu0 %1258
      %v1260 = vsel %vm460, %v1240, 0.0
      %1261 = vadd.xlane.f32.xlu0 %v1260
      %v1262 = vpop.xlane.xlu0 %1261
      %v1263 = vsel %vm460, %v1241, 0.0
      %1264 = vadd.xlane.f32.xlu0 %v1263
      %v1265 = vpop.xlane.xlu0 %1264
      %v1266 = vsel %vm460, %v1242, 0.0
      %1267 = vadd.xlane.f32.xlu0 %v1266
      %v1268 = vpop.xlane.xlu0 %1267
      %v1269 = vsel %vm460, %v1243, 0.0
      %1270 = vadd.xlane.f32.xlu0 %v1269
      %v1271 = vpop.xlane.xlu0 %1270
      %v1272 = vsel %vm460, %v1244, 0.0
      %1273 = vadd.xlane.f32.xlu0 %v1272
      %v1274 = vpop.xlane.xlu0 %1273
      %v1275 = vsel %vm460, %v1245, 0.0
      %1276 = vadd.xlane.f32.xlu0 %v1275
      %v1277 = vpop.xlane.xlu0 %1276
      %v1278 = vsel %vm460, %v1246, 0.0
      %1279 = vadd.xlane.f32.xlu0 %v1278
      %v1280 = vpop.xlane.xlu0 %1279
      %v1281 = vsel %vm460, %v1247, 0.0
      %1282 = vadd.xlane.f32.xlu0 %v1281
      %v1283 = vpop.xlane.xlu0 %1282
      %v1284 = vsel %vm460, %v1248, 0.0
      %1285 = vadd.xlane.f32.xlu0 %v1284
      %v1286 = vpop.xlane.xlu0 %1285
      %v1287 = vsel %vm460, %v1249, 0.0
      %1288 = vadd.xlane.f32.xlu0 %v1287
      %v1289 = vpop.xlane.xlu0 %1288
      %v1290 = vsel %vm460, %v1250, 0.0
      %1291 = vadd.xlane.f32.xlu0 %v1290
      %v1292 = vpop.xlane.xlu0 %1291
      %v1293 = vsel %vm460, %v1251, 0.0
      %1294 = vadd.xlane.f32.xlu0 %v1293
      %v1295 = vpop.xlane.xlu0 %1294
      %v1296 = vsel %vm460, %v1252, 0.0
      %1297 = vadd.xlane.f32.xlu0 %v1296
      %v1298 = vpop.xlane.xlu0 %1297
      %v1299 = vsel %vm460, %v1253, 0.0
      %1300 = vadd.xlane.f32.xlu0 %v1299
      %v1301 = vpop.xlane.xlu0 %1300
      %v1302 = vadd.f32 %v1256, %v916
      %v1303 = vadd.f32 %v1259, %v916
      %v1304 = vadd.f32 %v1262, %v916
      %v1305 = vadd.f32 %v1265, %v916
      %v1306 = vadd.f32 %v1268, %v916
      %v1307 = vadd.f32 %v1271, %v916
      %v1308 = vadd.f32 %v1274, %v916
      %v1309 = vadd.f32 %v1277, %v916
      %v1310 = vadd.f32 %v1280, %v916
      %v1311 = vadd.f32 %v1283, %v916
      %v1312 = vadd.f32 %v1286, %v916
      %v1313 = vadd.f32 %v1289, %v916
      %v1314 = vadd.f32 %v1292, %v916
      %v1315 = vadd.f32 %v1295, %v916
      %v1316 = vadd.f32 %v1298, %v916
      %v1317 = vadd.f32 %v1301, %v916
      %v1318 = vxor.u32 %v1302, 2147483648
      %v1319 = vxor.u32 %v1303, 2147483648
      %v1320 = vxor.u32 %v1304, 2147483648
      %v1321 = vxor.u32 %v1305, 2147483648
      %v1322 = vxor.u32 %v1306, 2147483648
      %v1323 = vxor.u32 %v1307, 2147483648
      %v1324 = vxor.u32 %v1308, 2147483648
      %v1325 = vxor.u32 %v1309, 2147483648
      %v1326 = vxor.u32 %v1310, 2147483648
      %v1327 = vxor.u32 %v1311, 2147483648
      %v1328 = vxor.u32 %v1312, 2147483648
      %v1329 = vxor.u32 %v1313, 2147483648
      %v1330 = vxor.u32 %v1314, 2147483648
      %v1331 = vxor.u32 %v1315, 2147483648
      %v1332 = vxor.u32 %v1316, 2147483648
      %v1333 = vxor.u32 %v1317, 2147483648
      %v1334 = vmul.f32 %v1318, 1.442695
      %v1335 = vpow.pop %v1334
      %v1336 = vmul.f32 %v1319, 1.442695
      %v1337 = vpow.pop %v1336
      %v1338 = vmul.f32 %v1320, 1.442695
      %v1339 = vpow.pop %v1338
      %v1340 = vmul.f32 %v1321, 1.442695
      %v1341 = vpow.pop %v1340
      %v1342 = vmul.f32 %v1322, 1.442695
      %v1343 = vpow.pop %v1342
      %v1344 = vmul.f32 %v1323, 1.442695
      %v1345 = vpow.pop %v1344
      %v1346 = vmul.f32 %v1324, 1.442695
      %v1347 = vpow.pop %v1346
      %v1348 = vmul.f32 %v1325, 1.442695
      %v1349 = vpow.pop %v1348
      %v1350 = vmul.f32 %v1326, 1.442695
      %v1351 = vpow.pop %v1350
      %v1352 = vmul.f32 %v1327, 1.442695
      %v1353 = vpow.pop %v1352
      %v1354 = vmul.f32 %v1328, 1.442695
      %v1355 = vpow.pop %v1354
      %v1356 = vmul.f32 %v1329, 1.442695
      %v1357 = vpow.pop %v1356
      %v1358 = vmul.f32 %v1330, 1.442695
      %v1359 = vpow.pop %v1358
      %v1360 = vmul.f32 %v1331, 1.442695
      %v1361 = vpow.pop %v1360
      %v1362 = vmul.f32 %v1332, 1.442695
      %v1363 = vpow.pop %v1362
      %v1364 = vmul.f32 %v1333, 1.442695
      %v1365 = vpow.pop %v1364
      %v1366 = vadd.f32 %v1335, 1.0
      %v1367 = vadd.f32 %v1337, 1.0
      %v1368 = vadd.f32 %v1339, 1.0
      %v1369 = vadd.f32 %v1341, 1.0
      %v1370 = vadd.f32 %v1343, 1.0
      %v1371 = vadd.f32 %v1345, 1.0
      %v1372 = vadd.f32 %v1347, 1.0
      %v1373 = vadd.f32 %v1349, 1.0
      %v1374 = vadd.f32 %v1351, 1.0
      %v1375 = vadd.f32 %v1353, 1.0
      %v1376 = vadd.f32 %v1355, 1.0
      %v1377 = vadd.f32 %v1357, 1.0
      %v1378 = vadd.f32 %v1359, 1.0
      %v1379 = vadd.f32 %v1361, 1.0
      %v1380 = vadd.f32 %v1363, 1.0
      %v1381 = vadd.f32 %v1365, 1.0
      %v1382 = vrcp.pop %v1366
      %v1383 = vmul.f32 %v1366, %v1382
      %v1384 = vsub.f32 1.0, %v1383
      %v1385 = vmul.f32 %v1382, %v1384
      %v1386 = vadd.f32 %v1382, %v1385
      %vm1387 = vweird.f32 %v1366
      %vm1388 = vweird.f32 %v1382
      %vm1389 = vmor %vm1387, %vm1388
      %v1390 = vsel %vm1389, %v1382, %v1386
      %v1391 = vand.u32 2147483647, %v1366
      %vm1392 = vcmp.eq.f32.partialorder %v1391, 8.507059e+37
      %v1393 = vand.u32 %v1366, 2147483648
      %v1394 = vor.u32 1.1754944e-38, %v1393
      %v1395 = vsel %vm1392, %v1394, %v1390
      %v1396 = vmul.f32 1.0, %v1395
      %v1397 = vrcp.pop %v1367
      %v1398 = vmul.f32 %v1367, %v1397
      %v1399 = vsub.f32 1.0, %v1398
      %v1400 = vmul.f32 %v1397, %v1399
      %v1401 = vadd.f32 %v1397, %v1400
      %vm1402 = vweird.f32 %v1367
      %vm1403 = vweird.f32 %v1397
      %vm1404 = vmor %vm1402, %vm1403
      %v1405 = vsel %vm1404, %v1397, %v1401
      %v1406 = vand.u32 2147483647, %v1367
      %vm1407 = vcmp.eq.f32.partialorder %v1406, 8.507059e+37
      %v1408 = vand.u32 %v1367, 2147483648
      %v1409 = vor.u32 1.1754944e-38, %v1408
      %v1410 = vsel %vm1407, %v1409, %v1405
      %v1411 = vmul.f32 1.0, %v1410
      %v1412 = vrcp.pop %v1368
      %v1413 = vmul.f32 %v1368, %v1412
      %v1414 = vsub.f32 1.0, %v1413
      %v1415 = vmul.f32 %v1412, %v1414
      %v1416 = vadd.f32 %v1412, %v1415
      %vm1417 = vweird.f32 %v1368
      %vm1418 = vweird.f32 %v1412
      %vm1419 = vmor %vm1417, %vm1418
      %v1420 = vsel %vm1419, %v1412, %v1416
      %v1421 = vand.u32 2147483647, %v1368
      %vm1422 = vcmp.eq.f32.partialorder %v1421, 8.507059e+37
      %v1423 = vand.u32 %v1368, 2147483648
      %v1424 = vor.u32 1.1754944e-38, %v1423
      %v1425 = vsel %vm1422, %v1424, %v1420
      %v1426 = vmul.f32 1.0, %v1425
      %v1427 = vrcp.pop %v1369
      %v1428 = vmul.f32 %v1369, %v1427
      %v1429 = vsub.f32 1.0, %v1428
      %v1430 = vmul.f32 %v1427, %v1429
      %v1431 = vadd.f32 %v1427, %v1430
      %vm1432 = vweird.f32 %v1369
      %vm1433 = vweird.f32 %v1427
      %vm1434 = vmor %vm1432, %vm1433
      %v1435 = vsel %vm1434, %v1427, %v1431
      %v1436 = vand.u32 2147483647, %v1369
      %vm1437 = vcmp.eq.f32.partialorder %v1436, 8.507059e+37
      %v1438 = vand.u32 %v1369, 2147483648
      %v1439 = vor.u32 1.1754944e-38, %v1438
      %v1440 = vsel %vm1437, %v1439, %v1435
      %v1441 = vmul.f32 1.0, %v1440
      %v1442 = vrcp.pop %v1370
      %v1443 = vmul.f32 %v1370, %v1442
      %v1444 = vsub.f32 1.0, %v1443
      %v1445 = vmul.f32 %v1442, %v1444
      %v1446 = vadd.f32 %v1442, %v1445
      %vm1447 = vweird.f32 %v1370
      %vm1448 = vweird.f32 %v1442
      %vm1449 = vmor %vm1447, %vm1448
      %v1450 = vsel %vm1449, %v1442, %v1446
      %v1451 = vand.u32 2147483647, %v1370
      %vm1452 = vcmp.eq.f32.partialorder %v1451, 8.507059e+37
      %v1453 = vand.u32 %v1370, 2147483648
      %v1454 = vor.u32 1.1754944e-38, %v1453
      %v1455 = vsel %vm1452, %v1454, %v1450
      %v1456 = vmul.f32 1.0, %v1455
      %v1457 = vrcp.pop %v1371
      %v1458 = vmul.f32 %v1371, %v1457
      %v1459 = vsub.f32 1.0, %v1458
      %v1460 = vmul.f32 %v1457, %v1459
      %v1461 = vadd.f32 %v1457, %v1460
      %vm1462 = vweird.f32 %v1371
      %vm1463 = vweird.f32 %v1457
      %vm1464 = vmor %vm1462, %vm1463
      %v1465 = vsel %vm1464, %v1457, %v1461
      %v1466 = vand.u32 2147483647, %v1371
      %vm1467 = vcmp.eq.f32.partialorder %v1466, 8.507059e+37
      %v1468 = vand.u32 %v1371, 2147483648
      %v1469 = vor.u32 1.1754944e-38, %v1468
      %v1470 = vsel %vm1467, %v1469, %v1465
      %v1471 = vmul.f32 1.0, %v1470
      %v1472 = vrcp.pop %v1372
      %v1473 = vmul.f32 %v1372, %v1472
      %v1474 = vsub.f32 1.0, %v1473
      %v1475 = vmul.f32 %v1472, %v1474
      %v1476 = vadd.f32 %v1472, %v1475
      %vm1477 = vweird.f32 %v1372
      %vm1478 = vweird.f32 %v1472
      %vm1479 = vmor %vm1477, %vm1478
      %v1480 = vsel %vm1479, %v1472, %v1476
      %v1481 = vand.u32 2147483647, %v1372
      %vm1482 = vcmp.eq.f32.partialorder %v1481, 8.507059e+37
      %v1483 = vand.u32 %v1372, 2147483648
      %v1484 = vor.u32 1.1754944e-38, %v1483
      %v1485 = vsel %vm1482, %v1484, %v1480
      %v1486 = vmul.f32 1.0, %v1485
      %v1487 = vrcp.pop %v1373
      %v1488 = vmul.f32 %v1373, %v1487
      %v1489 = vsub.f32 1.0, %v1488
      %v1490 = vmul.f32 %v1487, %v1489
      %v1491 = vadd.f32 %v1487, %v1490
      %vm1492 = vweird.f32 %v1373
      %vm1493 = vweird.f32 %v1487
      %vm1494 = vmor %vm1492, %vm1493
      %v1495 = vsel %vm1494, %v1487, %v1491
      %v1496 = vand.u32 2147483647, %v1373
      %vm1497 = vcmp.eq.f32.partialorder %v1496, 8.507059e+37
      %v1498 = vand.u32 %v1373, 2147483648
      %v1499 = vor.u32 1.1754944e-38, %v1498
      %v1500 = vsel %vm1497, %v1499, %v1495
      %v1501 = vmul.f32 1.0, %v1500
      %v1502 = vrcp.pop %v1374
      %v1503 = vmul.f32 %v1374, %v1502
      %v1504 = vsub.f32 1.0, %v1503
      %v1505 = vmul.f32 %v1502, %v1504
      %v1506 = vadd.f32 %v1502, %v1505
      %vm1507 = vweird.f32 %v1374
      %vm1508 = vweird.f32 %v1502
      %vm1509 = vmor %vm1507, %vm1508
      %v1510 = vsel %vm1509, %v1502, %v1506
      %v1511 = vand.u32 2147483647, %v1374
      %vm1512 = vcmp.eq.f32.partialorder %v1511, 8.507059e+37
      %v1513 = vand.u32 %v1374, 2147483648
      %v1514 = vor.u32 1.1754944e-38, %v1513
      %v1515 = vsel %vm1512, %v1514, %v1510
      %v1516 = vmul.f32 1.0, %v1515
      %v1517 = vrcp.pop %v1375
      %v1518 = vmul.f32 %v1375, %v1517
      %v1519 = vsub.f32 1.0, %v1518
      %v1520 = vmul.f32 %v1517, %v1519
      %v1521 = vadd.f32 %v1517, %v1520
      %vm1522 = vweird.f32 %v1375
      %vm1523 = vweird.f32 %v1517
      %vm1524 = vmor %vm1522, %vm1523
      %v1525 = vsel %vm1524, %v1517, %v1521
      %v1526 = vand.u32 2147483647, %v1375
      %vm1527 = vcmp.eq.f32.partialorder %v1526, 8.507059e+37
      %v1528 = vand.u32 %v1375, 2147483648
      %v1529 = vor.u32 1.1754944e-38, %v1528
      %v1530 = vsel %vm1527, %v1529, %v1525
      %v1531 = vmul.f32 1.0, %v1530
      %v1532 = vrcp.pop %v1376
      %v1533 = vmul.f32 %v1376, %v1532
      %v1534 = vsub.f32 1.0, %v1533
      %v1535 = vmul.f32 %v1532, %v1534
      %v1536 = vadd.f32 %v1532, %v1535
      %vm1537 = vweird.f32 %v1376
      %vm1538 = vweird.f32 %v1532
      %vm1539 = vmor %vm1537, %vm1538
      %v1540 = vsel %vm1539, %v1532, %v1536
      %v1541 = vand.u32 2147483647, %v1376
      %vm1542 = vcmp.eq.f32.partialorder %v1541, 8.507059e+37
      %v1543 = vand.u32 %v1376, 2147483648
      %v1544 = vor.u32 1.1754944e-38, %v1543
      %v1545 = vsel %vm1542, %v1544, %v1540
      %v1546 = vmul.f32 1.0, %v1545
      %v1547 = vrcp.pop %v1377
      %v1548 = vmul.f32 %v1377, %v1547
      %v1549 = vsub.f32 1.0, %v1548
      %v1550 = vmul.f32 %v1547, %v1549
      %v1551 = vadd.f32 %v1547, %v1550
      %vm1552 = vweird.f32 %v1377
      %vm1553 = vweird.f32 %v1547
      %vm1554 = vmor %vm1552, %vm1553
      %v1555 = vsel %vm1554, %v1547, %v1551
      %v1556 = vand.u32 2147483647, %v1377
      %vm1557 = vcmp.eq.f32.partialorder %v1556, 8.507059e+37
      %v1558 = vand.u32 %v1377, 2147483648
      %v1559 = vor.u32 1.1754944e-38, %v1558
      %v1560 = vsel %vm1557, %v1559, %v1555
      %v1561 = vmul.f32 1.0, %v1560
      %v1562 = vrcp.pop %v1378
      %v1563 = vmul.f32 %v1378, %v1562
      %v1564 = vsub.f32 1.0, %v1563
      %v1565 = vmul.f32 %v1562, %v1564
      %v1566 = vadd.f32 %v1562, %v1565
      %vm1567 = vweird.f32 %v1378
      %vm1568 = vweird.f32 %v1562
      %vm1569 = vmor %vm1567, %vm1568
      %v1570 = vsel %vm1569, %v1562, %v1566
      %v1571 = vand.u32 2147483647, %v1378
      %vm1572 = vcmp.eq.f32.partialorder %v1571, 8.507059e+37
      %v1573 = vand.u32 %v1378, 2147483648
      %v1574 = vor.u32 1.1754944e-38, %v1573
      %v1575 = vsel %vm1572, %v1574, %v1570
      %v1576 = vmul.f32 1.0, %v1575
      %v1577 = vrcp.pop %v1379
      %v1578 = vmul.f32 %v1379, %v1577
      %v1579 = vsub.f32 1.0, %v1578
      %v1580 = vmul.f32 %v1577, %v1579
      %v1581 = vadd.f32 %v1577, %v1580
      %vm1582 = vweird.f32 %v1379
      %vm1583 = vweird.f32 %v1577
      %vm1584 = vmor %vm1582, %vm1583
      %v1585 = vsel %vm1584, %v1577, %v1581
      %v1586 = vand.u32 2147483647, %v1379
      %vm1587 = vcmp.eq.f32.partialorder %v1586, 8.507059e+37
      %v1588 = vand.u32 %v1379, 2147483648
      %v1589 = vor.u32 1.1754944e-38, %v1588
      %v1590 = vsel %vm1587, %v1589, %v1585
      %v1591 = vmul.f32 1.0, %v1590
      %v1592 = vrcp.pop %v1380
      %v1593 = vmul.f32 %v1380, %v1592
      %v1594 = vsub.f32 1.0, %v1593
      %v1595 = vmul.f32 %v1592, %v1594
      %v1596 = vadd.f32 %v1592, %v1595
      %vm1597 = vweird.f32 %v1380
      %vm1598 = vweird.f32 %v1592
      %vm1599 = vmor %vm1597, %vm1598
      %v1600 = vsel %vm1599, %v1592, %v1596
      %v1601 = vand.u32 2147483647, %v1380
      %vm1602 = vcmp.eq.f32.partialorder %v1601, 8.507059e+37
      %v1603 = vand.u32 %v1380, 2147483648
      %v1604 = vor.u32 1.1754944e-38, %v1603
      %v1605 = vsel %vm1602, %v1604, %v1600
      %v1606 = vmul.f32 1.0, %v1605
      %v1607 = vrcp.pop %v1381
      %v1608 = vmul.f32 %v1381, %v1607
      %v1609 = vsub.f32 1.0, %v1608
      %v1610 = vmul.f32 %v1607, %v1609
      %v1611 = vadd.f32 %v1607, %v1610
      %vm1612 = vweird.f32 %v1381
      %vm1613 = vweird.f32 %v1607
      %vm1614 = vmor %vm1612, %vm1613
      %v1615 = vsel %vm1614, %v1607, %v1611
      %v1616 = vand.u32 2147483647, %v1381
      %vm1617 = vcmp.eq.f32.partialorder %v1616, 8.507059e+37
      %v1618 = vand.u32 %v1381, 2147483648
      %v1619 = vor.u32 1.1754944e-38, %v1618
      %v1620 = vsel %vm1617, %v1619, %v1615
      %v1621 = vmul.f32 1.0, %v1620
      %v1622 = vmul.f32 %v830, %v848
      %v1623 = vmul.f32 %v831, %v848
      %v1624 = vmul.f32 %v832, %v848
      %v1625 = vmul.f32 %v833, %v848
      %v1626 = vmul.f32 %v834, %v848
      %v1627 = vmul.f32 %v835, %v848
      %v1628 = vmul.f32 %v836, %v848
      %v1629 = vmul.f32 %v837, %v848
      %v1630 = vmul.f32 %v838, %v848
      %v1631 = vmul.f32 %v839, %v848
      %v1632 = vmul.f32 %v840, %v848
      %v1633 = vmul.f32 %v841, %v848
      %v1634 = vmul.f32 %v842, %v848
      %v1635 = vmul.f32 %v843, %v848
      %v1636 = vmul.f32 %v844, %v848
      %v1637 = vmul.f32 %v845, %v848
      %v1638 = vsel %vm460, %v1622, 0.0
      %1639 = vadd.xlane.f32.xlu0 %v1638
      %v1640 = vpop.xlane.xlu0 %1639
      %v1641 = vsel %vm460, %v1623, 0.0
      %1642 = vadd.xlane.f32.xlu0 %v1641
      %v1643 = vpop.xlane.xlu0 %1642
      %v1644 = vsel %vm460, %v1624, 0.0
      %1645 = vadd.xlane.f32.xlu0 %v1644
      %v1646 = vpop.xlane.xlu0 %1645
      %v1647 = vsel %vm460, %v1625, 0.0
      %1648 = vadd.xlane.f32.xlu0 %v1647
      %v1649 = vpop.xlane.xlu0 %1648
      %v1650 = vsel %vm460, %v1626, 0.0
      %1651 = vadd.xlane.f32.xlu0 %v1650
      %v1652 = vpop.xlane.xlu0 %1651
      %v1653 = vsel %vm460, %v1627, 0.0
      %1654 = vadd.xlane.f32.xlu0 %v1653
      %v1655 = vpop.xlane.xlu0 %1654
      %v1656 = vsel %vm460, %v1628, 0.0
      %1657 = vadd.xlane.f32.xlu0 %v1656
      %v1658 = vpop.xlane.xlu0 %1657
      %v1659 = vsel %vm460, %v1629, 0.0
      %1660 = vadd.xlane.f32.xlu0 %v1659
      %v1661 = vpop.xlane.xlu0 %1660
      %v1662 = vsel %vm460, %v1630, 0.0
      %1663 = vadd.xlane.f32.xlu0 %v1662
      %v1664 = vpop.xlane.xlu0 %1663
      %v1665 = vsel %vm460, %v1631, 0.0
      %1666 = vadd.xlane.f32.xlu0 %v1665
      %v1667 = vpop.xlane.xlu0 %1666
      %v1668 = vsel %vm460, %v1632, 0.0
      %1669 = vadd.xlane.f32.xlu0 %v1668
      %v1670 = vpop.xlane.xlu0 %1669
      %v1671 = vsel %vm460, %v1633, 0.0
      %1672 = vadd.xlane.f32.xlu0 %v1671
      %v1673 = vpop.xlane.xlu0 %1672
      %v1674 = vsel %vm460, %v1634, 0.0
      %1675 = vadd.xlane.f32.xlu0 %v1674
      %v1676 = vpop.xlane.xlu0 %1675
      %v1677 = vsel %vm460, %v1635, 0.0
      %1678 = vadd.xlane.f32.xlu0 %v1677
      %v1679 = vpop.xlane.xlu0 %1678
      %v1680 = vsel %vm460, %v1636, 0.0
      %1681 = vadd.xlane.f32.xlu0 %v1680
      %v1682 = vpop.xlane.xlu0 %1681
      %v1683 = vsel %vm460, %v1637, 0.0
      %1684 = vadd.xlane.f32.xlu0 %v1683
      %v1685 = vpop.xlane.xlu0 %1684
      %v1686 = vadd.f32 %v1640, %v916
      %v1687 = vadd.f32 %v1643, %v916
      %v1688 = vadd.f32 %v1646, %v916
      %v1689 = vadd.f32 %v1649, %v916
      %v1690 = vadd.f32 %v1652, %v916
      %v1691 = vadd.f32 %v1655, %v916
      %v1692 = vadd.f32 %v1658, %v916
      %v1693 = vadd.f32 %v1661, %v916
      %v1694 = vadd.f32 %v1664, %v916
      %v1695 = vadd.f32 %v1667, %v916
      %v1696 = vadd.f32 %v1670, %v916
      %v1697 = vadd.f32 %v1673, %v916
      %v1698 = vadd.f32 %v1676, %v916
      %v1699 = vadd.f32 %v1679, %v916
      %v1700 = vadd.f32 %v1682, %v916
      %v1701 = vadd.f32 %v1685, %v916
      %v1702 = vxor.u32 %v1686, 2147483648
      %v1703 = vxor.u32 %v1687, 2147483648
      %v1704 = vxor.u32 %v1688, 2147483648
      %v1705 = vxor.u32 %v1689, 2147483648
      %v1706 = vxor.u32 %v1690, 2147483648
      %v1707 = vxor.u32 %v1691, 2147483648
      %v1708 = vxor.u32 %v1692, 2147483648
      %v1709 = vxor.u32 %v1693, 2147483648
      %v1710 = vxor.u32 %v1694, 2147483648
      %v1711 = vxor.u32 %v1695, 2147483648
      %v1712 = vxor.u32 %v1696, 2147483648
      %v1713 = vxor.u32 %v1697, 2147483648
      %v1714 = vxor.u32 %v1698, 2147483648
      %v1715 = vxor.u32 %v1699, 2147483648
      %v1716 = vxor.u32 %v1700, 2147483648
      %v1717 = vxor.u32 %v1701, 2147483648
      %v1718 = vmul.f32 %v1702, 1.442695
      %v1719 = vpow.pop %v1718
      %v1720 = vmul.f32 %v1703, 1.442695
      %v1721 = vpow.pop %v1720
      %v1722 = vmul.f32 %v1704, 1.442695
      %v1723 = vpow.pop %v1722
      %v1724 = vmul.f32 %v1705, 1.442695
      %v1725 = vpow.pop %v1724
      %v1726 = vmul.f32 %v1706, 1.442695
      %v1727 = vpow.pop %v1726
      %v1728 = vmul.f32 %v1707, 1.442695
      %v1729 = vpow.pop %v1728
      %v1730 = vmul.f32 %v1708, 1.442695
      %v1731 = vpow.pop %v1730
      %v1732 = vmul.f32 %v1709, 1.442695
      %v1733 = vpow.pop %v1732
      %v1734 = vmul.f32 %v1710, 1.442695
      %v1735 = vpow.pop %v1734
      %v1736 = vmul.f32 %v1711, 1.442695
      %v1737 = vpow.pop %v1736
      %v1738 = vmul.f32 %v1712, 1.442695
      %v1739 = vpow.pop %v1738
      %v1740 = vmul.f32 %v1713, 1.442695
      %v1741 = vpow.pop %v1740
      %v1742 = vmul.f32 %v1714, 1.442695
      %v1743 = vpow.pop %v1742
      %v1744 = vmul.f32 %v1715, 1.442695
      %v1745 = vpow.pop %v1744
      %v1746 = vmul.f32 %v1716, 1.442695
      %v1747 = vpow.pop %v1746
      %v1748 = vmul.f32 %v1717, 1.442695
      %v1749 = vpow.pop %v1748
      %v1750 = vadd.f32 %v1719, 1.0
      %v1751 = vadd.f32 %v1721, 1.0
      %v1752 = vadd.f32 %v1723, 1.0
      %v1753 = vadd.f32 %v1725, 1.0
      %v1754 = vadd.f32 %v1727, 1.0
      %v1755 = vadd.f32 %v1729, 1.0
      %v1756 = vadd.f32 %v1731, 1.0
      %v1757 = vadd.f32 %v1733, 1.0
      %v1758 = vadd.f32 %v1735, 1.0
      %v1759 = vadd.f32 %v1737, 1.0
      %v1760 = vadd.f32 %v1739, 1.0
      %v1761 = vadd.f32 %v1741, 1.0
      %v1762 = vadd.f32 %v1743, 1.0
      %v1763 = vadd.f32 %v1745, 1.0
      %v1764 = vadd.f32 %v1747, 1.0
      %v1765 = vadd.f32 %v1749, 1.0
      %v1766 = vrcp.pop %v1750
      %v1767 = vmul.f32 %v1750, %v1766
      %v1768 = vsub.f32 1.0, %v1767
      %v1769 = vmul.f32 %v1766, %v1768
      %v1770 = vadd.f32 %v1766, %v1769
      %vm1771 = vweird.f32 %v1750
      %vm1772 = vweird.f32 %v1766
      %vm1773 = vmor %vm1771, %vm1772
      %v1774 = vsel %vm1773, %v1766, %v1770
      %v1775 = vand.u32 2147483647, %v1750
      %vm1776 = vcmp.eq.f32.partialorder %v1775, 8.507059e+37
      %v1777 = vand.u32 %v1750, 2147483648
      %v1778 = vor.u32 1.1754944e-38, %v1777
      %v1779 = vsel %vm1776, %v1778, %v1774
      %v1780 = vmul.f32 1.0, %v1779
      %v1781 = vrcp.pop %v1751
      %v1782 = vmul.f32 %v1751, %v1781
      %v1783 = vsub.f32 1.0, %v1782
      %v1784 = vmul.f32 %v1781, %v1783
      %v1785 = vadd.f32 %v1781, %v1784
      %vm1786 = vweird.f32 %v1751
      %vm1787 = vweird.f32 %v1781
      %vm1788 = vmor %vm1786, %vm1787
      %v1789 = vsel %vm1788, %v1781, %v1785
      %v1790 = vand.u32 2147483647, %v1751
      %vm1791 = vcmp.eq.f32.partialorder %v1790, 8.507059e+37
      %v1792 = vand.u32 %v1751, 2147483648
      %v1793 = vor.u32 1.1754944e-38, %v1792
      %v1794 = vsel %vm1791, %v1793, %v1789
      %v1795 = vmul.f32 1.0, %v1794
      %v1796 = vrcp.pop %v1752
      %v1797 = vmul.f32 %v1752, %v1796
      %v1798 = vsub.f32 1.0, %v1797
      %v1799 = vmul.f32 %v1796, %v1798
      %v1800 = vadd.f32 %v1796, %v1799
      %vm1801 = vweird.f32 %v1752
      %vm1802 = vweird.f32 %v1796
      %vm1803 = vmor %vm1801, %vm1802
      %v1804 = vsel %vm1803, %v1796, %v1800
      %v1805 = vand.u32 2147483647, %v1752
      %vm1806 = vcmp.eq.f32.partialorder %v1805, 8.507059e+37
      %v1807 = vand.u32 %v1752, 2147483648
      %v1808 = vor.u32 1.1754944e-38, %v1807
      %v1809 = vsel %vm1806, %v1808, %v1804
      %v1810 = vmul.f32 1.0, %v1809
      %v1811 = vrcp.pop %v1753
      %v1812 = vmul.f32 %v1753, %v1811
      %v1813 = vsub.f32 1.0, %v1812
      %v1814 = vmul.f32 %v1811, %v1813
      %v1815 = vadd.f32 %v1811, %v1814
      %vm1816 = vweird.f32 %v1753
      %vm1817 = vweird.f32 %v1811
      %vm1818 = vmor %vm1816, %vm1817
      %v1819 = vsel %vm1818, %v1811, %v1815
      %v1820 = vand.u32 2147483647, %v1753
      %vm1821 = vcmp.eq.f32.partialorder %v1820, 8.507059e+37
      %v1822 = vand.u32 %v1753, 2147483648
      %v1823 = vor.u32 1.1754944e-38, %v1822
      %v1824 = vsel %vm1821, %v1823, %v1819
      %v1825 = vmul.f32 1.0, %v1824
      %v1826 = vrcp.pop %v1754
      %v1827 = vmul.f32 %v1754, %v1826
      %v1828 = vsub.f32 1.0, %v1827
      %v1829 = vmul.f32 %v1826, %v1828
      %v1830 = vadd.f32 %v1826, %v1829
      %vm1831 = vweird.f32 %v1754
      %vm1832 = vweird.f32 %v1826
      %vm1833 = vmor %vm1831, %vm1832
      %v1834 = vsel %vm1833, %v1826, %v1830
      %v1835 = vand.u32 2147483647, %v1754
      %vm1836 = vcmp.eq.f32.partialorder %v1835, 8.507059e+37
      %v1837 = vand.u32 %v1754, 2147483648
      %v1838 = vor.u32 1.1754944e-38, %v1837
      %v1839 = vsel %vm1836, %v1838, %v1834
      %v1840 = vmul.f32 1.0, %v1839
      %v1841 = vrcp.pop %v1755
      %v1842 = vmul.f32 %v1755, %v1841
      %v1843 = vsub.f32 1.0, %v1842
      %v1844 = vmul.f32 %v1841, %v1843
      %v1845 = vadd.f32 %v1841, %v1844
      %vm1846 = vweird.f32 %v1755
      %vm1847 = vweird.f32 %v1841
      %vm1848 = vmor %vm1846, %vm1847
      %v1849 = vsel %vm1848, %v1841, %v1845
      %v1850 = vand.u32 2147483647, %v1755
      %vm1851 = vcmp.eq.f32.partialorder %v1850, 8.507059e+37
      %v1852 = vand.u32 %v1755, 2147483648
      %v1853 = vor.u32 1.1754944e-38, %v1852
      %v1854 = vsel %vm1851, %v1853, %v1849
      %v1855 = vmul.f32 1.0, %v1854
      %v1856 = vrcp.pop %v1756
      %v1857 = vmul.f32 %v1756, %v1856
      %v1858 = vsub.f32 1.0, %v1857
      %v1859 = vmul.f32 %v1856, %v1858
      %v1860 = vadd.f32 %v1856, %v1859
      %vm1861 = vweird.f32 %v1756
      %vm1862 = vweird.f32 %v1856
      %vm1863 = vmor %vm1861, %vm1862
      %v1864 = vsel %vm1863, %v1856, %v1860
      %v1865 = vand.u32 2147483647, %v1756
      %vm1866 = vcmp.eq.f32.partialorder %v1865, 8.507059e+37
      %v1867 = vand.u32 %v1756, 2147483648
      %v1868 = vor.u32 1.1754944e-38, %v1867
      %v1869 = vsel %vm1866, %v1868, %v1864
      %v1870 = vmul.f32 1.0, %v1869
      %v1871 = vrcp.pop %v1757
      %v1872 = vmul.f32 %v1757, %v1871
      %v1873 = vsub.f32 1.0, %v1872
      %v1874 = vmul.f32 %v1871, %v1873
      %v1875 = vadd.f32 %v1871, %v1874
      %vm1876 = vweird.f32 %v1757
      %vm1877 = vweird.f32 %v1871
      %vm1878 = vmor %vm1876, %vm1877
      %v1879 = vsel %vm1878, %v1871, %v1875
      %v1880 = vand.u32 2147483647, %v1757
      %vm1881 = vcmp.eq.f32.partialorder %v1880, 8.507059e+37
      %v1882 = vand.u32 %v1757, 2147483648
      %v1883 = vor.u32 1.1754944e-38, %v1882
      %v1884 = vsel %vm1881, %v1883, %v1879
      %v1885 = vmul.f32 1.0, %v1884
      %v1886 = vrcp.pop %v1758
      %v1887 = vmul.f32 %v1758, %v1886
      %v1888 = vsub.f32 1.0, %v1887
      %v1889 = vmul.f32 %v1886, %v1888
      %v1890 = vadd.f32 %v1886, %v1889
      %vm1891 = vweird.f32 %v1758
      %vm1892 = vweird.f32 %v1886
      %vm1893 = vmor %vm1891, %vm1892
      %v1894 = vsel %vm1893, %v1886, %v1890
      %v1895 = vand.u32 2147483647, %v1758
      %vm1896 = vcmp.eq.f32.partialorder %v1895, 8.507059e+37
      %v1897 = vand.u32 %v1758, 2147483648
      %v1898 = vor.u32 1.1754944e-38, %v1897
      %v1899 = vsel %vm1896, %v1898, %v1894
      %v1900 = vmul.f32 1.0, %v1899
      %v1901 = vrcp.pop %v1759
      %v1902 = vmul.f32 %v1759, %v1901
      %v1903 = vsub.f32 1.0, %v1902
      %v1904 = vmul.f32 %v1901, %v1903
      %v1905 = vadd.f32 %v1901, %v1904
      %vm1906 = vweird.f32 %v1759
      %vm1907 = vweird.f32 %v1901
      %vm1908 = vmor %vm1906, %vm1907
      %v1909 = vsel %vm1908, %v1901, %v1905
      %v1910 = vand.u32 2147483647, %v1759
      %vm1911 = vcmp.eq.f32.partialorder %v1910, 8.507059e+37
      %v1912 = vand.u32 %v1759, 2147483648
      %v1913 = vor.u32 1.1754944e-38, %v1912
      %v1914 = vsel %vm1911, %v1913, %v1909
      %v1915 = vmul.f32 1.0, %v1914
      %v1916 = vrcp.pop %v1760
      %v1917 = vmul.f32 %v1760, %v1916
      %v1918 = vsub.f32 1.0, %v1917
      %v1919 = vmul.f32 %v1916, %v1918
      %v1920 = vadd.f32 %v1916, %v1919
      %vm1921 = vweird.f32 %v1760
      %vm1922 = vweird.f32 %v1916
      %vm1923 = vmor %vm1921, %vm1922
      %v1924 = vsel %vm1923, %v1916, %v1920
      %v1925 = vand.u32 2147483647, %v1760
      %vm1926 = vcmp.eq.f32.partialorder %v1925, 8.507059e+37
      %v1927 = vand.u32 %v1760, 2147483648
      %v1928 = vor.u32 1.1754944e-38, %v1927
      %v1929 = vsel %vm1926, %v1928, %v1924
      %v1930 = vmul.f32 1.0, %v1929
      %v1931 = vrcp.pop %v1761
      %v1932 = vmul.f32 %v1761, %v1931
      %v1933 = vsub.f32 1.0, %v1932
      %v1934 = vmul.f32 %v1931, %v1933
      %v1935 = vadd.f32 %v1931, %v1934
      %vm1936 = vweird.f32 %v1761
      %vm1937 = vweird.f32 %v1931
      %vm1938 = vmor %vm1936, %vm1937
      %v1939 = vsel %vm1938, %v1931, %v1935
      %v1940 = vand.u32 2147483647, %v1761
      %vm1941 = vcmp.eq.f32.partialorder %v1940, 8.507059e+37
      %v1942 = vand.u32 %v1761, 2147483648
      %v1943 = vor.u32 1.1754944e-38, %v1942
      %v1944 = vsel %vm1941, %v1943, %v1939
      %v1945 = vmul.f32 1.0, %v1944
      %v1946 = vrcp.pop %v1762
      %v1947 = vmul.f32 %v1762, %v1946
      %v1948 = vsub.f32 1.0, %v1947
      %v1949 = vmul.f32 %v1946, %v1948
      %v1950 = vadd.f32 %v1946, %v1949
      %vm1951 = vweird.f32 %v1762
      %vm1952 = vweird.f32 %v1946
      %vm1953 = vmor %vm1951, %vm1952
      %v1954 = vsel %vm1953, %v1946, %v1950
      %v1955 = vand.u32 2147483647, %v1762
      %vm1956 = vcmp.eq.f32.partialorder %v1955, 8.507059e+37
      %v1957 = vand.u32 %v1762, 2147483648
      %v1958 = vor.u32 1.1754944e-38, %v1957
      %v1959 = vsel %vm1956, %v1958, %v1954
      %v1960 = vmul.f32 1.0, %v1959
      %v1961 = vrcp.pop %v1763
      %v1962 = vmul.f32 %v1763, %v1961
      %v1963 = vsub.f32 1.0, %v1962
      %v1964 = vmul.f32 %v1961, %v1963
      %v1965 = vadd.f32 %v1961, %v1964
      %vm1966 = vweird.f32 %v1763
      %vm1967 = vweird.f32 %v1961
      %vm1968 = vmor %vm1966, %vm1967
      %v1969 = vsel %vm1968, %v1961, %v1965
      %v1970 = vand.u32 2147483647, %v1763
      %vm1971 = vcmp.eq.f32.partialorder %v1970, 8.507059e+37
      %v1972 = vand.u32 %v1763, 2147483648
      %v1973 = vor.u32 1.1754944e-38, %v1972
      %v1974 = vsel %vm1971, %v1973, %v1969
      %v1975 = vmul.f32 1.0, %v1974
      %v1976 = vrcp.pop %v1764
      %v1977 = vmul.f32 %v1764, %v1976
      %v1978 = vsub.f32 1.0, %v1977
      %v1979 = vmul.f32 %v1976, %v1978
      %v1980 = vadd.f32 %v1976, %v1979
      %vm1981 = vweird.f32 %v1764
      %vm1982 = vweird.f32 %v1976
      %vm1983 = vmor %vm1981, %vm1982
      %v1984 = vsel %vm1983, %v1976, %v1980
      %v1985 = vand.u32 2147483647, %v1764
      %vm1986 = vcmp.eq.f32.partialorder %v1985, 8.507059e+37
      %v1987 = vand.u32 %v1764, 2147483648
      %v1988 = vor.u32 1.1754944e-38, %v1987
      %v1989 = vsel %vm1986, %v1988, %v1984
      %v1990 = vmul.f32 1.0, %v1989
      %v1991 = vrcp.pop %v1765
      %v1992 = vmul.f32 %v1765, %v1991
      %v1993 = vsub.f32 1.0, %v1992
      %v1994 = vmul.f32 %v1991, %v1993
      %v1995 = vadd.f32 %v1991, %v1994
      %vm1996 = vweird.f32 %v1765
      %vm1997 = vweird.f32 %v1991
      %vm1998 = vmor %vm1996, %vm1997
      %v1999 = vsel %vm1998, %v1991, %v1995
      %v2000 = vand.u32 2147483647, %v1765
      %vm2001 = vcmp.eq.f32.partialorder %v2000, 8.507059e+37
      %v2002 = vand.u32 %v1765, 2147483648
      %v2003 = vor.u32 1.1754944e-38, %v2002
      %v2004 = vsel %vm2001, %v2003, %v1999
      %v2005 = vmul.f32 1.0, %v2004
      %v2006 = vadd.f32 %v1012, %v1396
      %v2007 = vadd.f32 %v1027, %v1411
      %v2008 = vadd.f32 %v1042, %v1426
      %v2009 = vadd.f32 %v1057, %v1441
      %v2010 = vadd.f32 %v1072, %v1456
      %v2011 = vadd.f32 %v1087, %v1471
      %v2012 = vadd.f32 %v1102, %v1486
      %v2013 = vadd.f32 %v1117, %v1501
      %v2014 = vadd.f32 %v1132, %v1516
      %v2015 = vadd.f32 %v1147, %v1531
      %v2016 = vadd.f32 %v1162, %v1546
      %v2017 = vadd.f32 %v1177, %v1561
      %v2018 = vadd.f32 %v1192, %v1576
      %v2019 = vadd.f32 %v1207, %v1591
      %v2020 = vadd.f32 %v1222, %v1606
      %v2021 = vadd.f32 %v1237, %v1621
      %v2022 = vadd.f32 %v2006, %v1780
      %v2023 = vadd.f32 %v2007, %v1795
      %v2024 = vadd.f32 %v2008, %v1810
      %v2025 = vadd.f32 %v2009, %v1825
      %v2026 = vadd.f32 %v2010, %v1840
      %v2027 = vadd.f32 %v2011, %v1855
      %v2028 = vadd.f32 %v2012, %v1870
      %v2029 = vadd.f32 %v2013, %v1885
      %v2030 = vadd.f32 %v2014, %v1900
      %v2031 = vadd.f32 %v2015, %v1915
      %v2032 = vadd.f32 %v2016, %v1930
      %v2033 = vadd.f32 %v2017, %v1945
      %v2034 = vadd.f32 %v2018, %v1960
      %v2035 = vadd.f32 %v2019, %v1975
      %v2036 = vadd.f32 %v2020, %v1990
      %v2037 = vadd.f32 %v2021, %v2005
      %v2038 = vrcp.pop %v2022
      %v2039 = vmul.f32 %v2022, %v2038
      %v2040 = vsub.f32 1.0, %v2039
      %v2041 = vmul.f32 %v2038, %v2040
      %v2042 = vadd.f32 %v2038, %v2041
      %vm2043 = vweird.f32 %v2022
      %vm2044 = vweird.f32 %v2038
      %vm2045 = vmor %vm2043, %vm2044
      %v2046 = vsel %vm2045, %v2038, %v2042
      %v2047 = vand.u32 2147483647, %v2022
      %vm2048 = vcmp.eq.f32.partialorder %v2047, 8.507059e+37
      %v2049 = vand.u32 %v2022, 2147483648
      %v2050 = vor.u32 1.1754944e-38, %v2049
      %v2051 = vsel %vm2048, %v2050, %v2046
      %v2052 = vmul.f32 1.0, %v2051
      %v2053 = vrcp.pop %v2023
      %v2054 = vmul.f32 %v2023, %v2053
      %v2055 = vsub.f32 1.0, %v2054
      %v2056 = vmul.f32 %v2053, %v2055
      %v2057 = vadd.f32 %v2053, %v2056
      %vm2058 = vweird.f32 %v2023
      %vm2059 = vweird.f32 %v2053
      %vm2060 = vmor %vm2058, %vm2059
      %v2061 = vsel %vm2060, %v2053, %v2057
      %v2062 = vand.u32 2147483647, %v2023
      %vm2063 = vcmp.eq.f32.partialorder %v2062, 8.507059e+37
      %v2064 = vand.u32 %v2023, 2147483648
      %v2065 = vor.u32 1.1754944e-38, %v2064
      %v2066 = vsel %vm2063, %v2065, %v2061
      %v2067 = vmul.f32 1.0, %v2066
      %v2068 = vrcp.pop %v2024
      %v2069 = vmul.f32 %v2024, %v2068
      %v2070 = vsub.f32 1.0, %v2069
      %v2071 = vmul.f32 %v2068, %v2070
      %v2072 = vadd.f32 %v2068, %v2071
      %vm2073 = vweird.f32 %v2024
      %vm2074 = vweird.f32 %v2068
      %vm2075 = vmor %vm2073, %vm2074
      %v2076 = vsel %vm2075, %v2068, %v2072
      %v2077 = vand.u32 2147483647, %v2024
      %vm2078 = vcmp.eq.f32.partialorder %v2077, 8.507059e+37
      %v2079 = vand.u32 %v2024, 2147483648
      %v2080 = vor.u32 1.1754944e-38, %v2079
      %v2081 = vsel %vm2078, %v2080, %v2076
      %v2082 = vmul.f32 1.0, %v2081
      %v2083 = vrcp.pop %v2025
      %v2084 = vmul.f32 %v2025, %v2083
      %v2085 = vsub.f32 1.0, %v2084
      %v2086 = vmul.f32 %v2083, %v2085
      %v2087 = vadd.f32 %v2083, %v2086
      %vm2088 = vweird.f32 %v2025
      %vm2089 = vweird.f32 %v2083
      %vm2090 = vmor %vm2088, %vm2089
      %v2091 = vsel %vm2090, %v2083, %v2087
      %v2092 = vand.u32 2147483647, %v2025
      %vm2093 = vcmp.eq.f32.partialorder %v2092, 8.507059e+37
      %v2094 = vand.u32 %v2025, 2147483648
      %v2095 = vor.u32 1.1754944e-38, %v2094
      %v2096 = vsel %vm2093, %v2095, %v2091
      %v2097 = vmul.f32 1.0, %v2096
      %v2098 = vrcp.pop %v2026
      %v2099 = vmul.f32 %v2026, %v2098
      %v2100 = vsub.f32 1.0, %v2099
      %v2101 = vmul.f32 %v2098, %v2100
      %v2102 = vadd.f32 %v2098, %v2101
      %vm2103 = vweird.f32 %v2026
      %vm2104 = vweird.f32 %v2098
      %vm2105 = vmor %vm2103, %vm2104
      %v2106 = vsel %vm2105, %v2098, %v2102
      %v2107 = vand.u32 2147483647, %v2026
      %vm2108 = vcmp.eq.f32.partialorder %v2107, 8.507059e+37
      %v2109 = vand.u32 %v2026, 2147483648
      %v2110 = vor.u32 1.1754944e-38, %v2109
      %v2111 = vsel %vm2108, %v2110, %v2106
      %v2112 = vmul.f32 1.0, %v2111
      %v2113 = vrcp.pop %v2027
      %v2114 = vmul.f32 %v2027, %v2113
      %v2115 = vsub.f32 1.0, %v2114
      %v2116 = vmul.f32 %v2113, %v2115
      %v2117 = vadd.f32 %v2113, %v2116
      %vm2118 = vweird.f32 %v2027
      %vm2119 = vweird.f32 %v2113
      %vm2120 = vmor %vm2118, %vm2119
      %v2121 = vsel %vm2120, %v2113, %v2117
      %v2122 = vand.u32 2147483647, %v2027
      %vm2123 = vcmp.eq.f32.partialorder %v2122, 8.507059e+37
      %v2124 = vand.u32 %v2027, 2147483648
      %v2125 = vor.u32 1.1754944e-38, %v2124
      %v2126 = vsel %vm2123, %v2125, %v2121
      %v2127 = vmul.f32 1.0, %v2126
      %v2128 = vrcp.pop %v2028
      %v2129 = vmul.f32 %v2028, %v2128
      %v2130 = vsub.f32 1.0, %v2129
      %v2131 = vmul.f32 %v2128, %v2130
      %v2132 = vadd.f32 %v2128, %v2131
      %vm2133 = vweird.f32 %v2028
      %vm2134 = vweird.f32 %v2128
      %vm2135 = vmor %vm2133, %vm2134
      %v2136 = vsel %vm2135, %v2128, %v2132
      %v2137 = vand.u32 2147483647, %v2028
      %vm2138 = vcmp.eq.f32.partialorder %v2137, 8.507059e+37
      %v2139 = vand.u32 %v2028, 2147483648
      %v2140 = vor.u32 1.1754944e-38, %v2139
      %v2141 = vsel %vm2138, %v2140, %v2136
      %v2142 = vmul.f32 1.0, %v2141
      %v2143 = vrcp.pop %v2029
      %v2144 = vmul.f32 %v2029, %v2143
      %v2145 = vsub.f32 1.0, %v2144
      %v2146 = vmul.f32 %v2143, %v2145
      %v2147 = vadd.f32 %v2143, %v2146
      %vm2148 = vweird.f32 %v2029
      %vm2149 = vweird.f32 %v2143
      %vm2150 = vmor %vm2148, %vm2149
      %v2151 = vsel %vm2150, %v2143, %v2147
      %v2152 = vand.u32 2147483647, %v2029
      %vm2153 = vcmp.eq.f32.partialorder %v2152, 8.507059e+37
      %v2154 = vand.u32 %v2029, 2147483648
      %v2155 = vor.u32 1.1754944e-38, %v2154
      %v2156 = vsel %vm2153, %v2155, %v2151
      %v2157 = vmul.f32 1.0, %v2156
      %v2158 = vrcp.pop %v2030
      %v2159 = vmul.f32 %v2030, %v2158
      %v2160 = vsub.f32 1.0, %v2159
      %v2161 = vmul.f32 %v2158, %v2160
      %v2162 = vadd.f32 %v2158, %v2161
      %vm2163 = vweird.f32 %v2030
      %vm2164 = vweird.f32 %v2158
      %vm2165 = vmor %vm2163, %vm2164
      %v2166 = vsel %vm2165, %v2158, %v2162
      %v2167 = vand.u32 2147483647, %v2030
      %vm2168 = vcmp.eq.f32.partialorder %v2167, 8.507059e+37
      %v2169 = vand.u32 %v2030, 2147483648
      %v2170 = vor.u32 1.1754944e-38, %v2169
      %v2171 = vsel %vm2168, %v2170, %v2166
      %v2172 = vmul.f32 1.0, %v2171
      %v2173 = vrcp.pop %v2031
      %v2174 = vmul.f32 %v2031, %v2173
      %v2175 = vsub.f32 1.0, %v2174
      %v2176 = vmul.f32 %v2173, %v2175
      %v2177 = vadd.f32 %v2173, %v2176
      %vm2178 = vweird.f32 %v2031
      %vm2179 = vweird.f32 %v2173
      %vm2180 = vmor %vm2178, %vm2179
      %v2181 = vsel %vm2180, %v2173, %v2177
      %v2182 = vand.u32 2147483647, %v2031
      %vm2183 = vcmp.eq.f32.partialorder %v2182, 8.507059e+37
      %v2184 = vand.u32 %v2031, 2147483648
      %v2185 = vor.u32 1.1754944e-38, %v2184
      %v2186 = vsel %vm2183, %v2185, %v2181
      %v2187 = vmul.f32 1.0, %v2186
      %v2188 = vrcp.pop %v2032
      %v2189 = vmul.f32 %v2032, %v2188
      %v2190 = vsub.f32 1.0, %v2189
      %v2191 = vmul.f32 %v2188, %v2190
      %v2192 = vadd.f32 %v2188, %v2191
      %vm2193 = vweird.f32 %v2032
      %vm2194 = vweird.f32 %v2188
      %vm2195 = vmor %vm2193, %vm2194
      %v2196 = vsel %vm2195, %v2188, %v2192
      %v2197 = vand.u32 2147483647, %v2032
      %vm2198 = vcmp.eq.f32.partialorder %v2197, 8.507059e+37
      %v2199 = vand.u32 %v2032, 2147483648
      %v2200 = vor.u32 1.1754944e-38, %v2199
      %v2201 = vsel %vm2198, %v2200, %v2196
      %v2202 = vmul.f32 1.0, %v2201
      %v2203 = vrcp.pop %v2033
      %v2204 = vmul.f32 %v2033, %v2203
      %v2205 = vsub.f32 1.0, %v2204
      %v2206 = vmul.f32 %v2203, %v2205
      %v2207 = vadd.f32 %v2203, %v2206
      %vm2208 = vweird.f32 %v2033
      %vm2209 = vweird.f32 %v2203
      %vm2210 = vmor %vm2208, %vm2209
      %v2211 = vsel %vm2210, %v2203, %v2207
      %v2212 = vand.u32 2147483647, %v2033
      %vm2213 = vcmp.eq.f32.partialorder %v2212, 8.507059e+37
      %v2214 = vand.u32 %v2033, 2147483648
      %v2215 = vor.u32 1.1754944e-38, %v2214
      %v2216 = vsel %vm2213, %v2215, %v2211
      %v2217 = vmul.f32 1.0, %v2216
      %v2218 = vrcp.pop %v2034
      %v2219 = vmul.f32 %v2034, %v2218
      %v2220 = vsub.f32 1.0, %v2219
      %v2221 = vmul.f32 %v2218, %v2220
      %v2222 = vadd.f32 %v2218, %v2221
      %vm2223 = vweird.f32 %v2034
      %vm2224 = vweird.f32 %v2218
      %vm2225 = vmor %vm2223, %vm2224
      %v2226 = vsel %vm2225, %v2218, %v2222
      %v2227 = vand.u32 2147483647, %v2034
      %vm2228 = vcmp.eq.f32.partialorder %v2227, 8.507059e+37
      %v2229 = vand.u32 %v2034, 2147483648
      %v2230 = vor.u32 1.1754944e-38, %v2229
      %v2231 = vsel %vm2228, %v2230, %v2226
      %v2232 = vmul.f32 1.0, %v2231
      %v2233 = vrcp.pop %v2035
      %v2234 = vmul.f32 %v2035, %v2233
      %v2235 = vsub.f32 1.0, %v2234
      %v2236 = vmul.f32 %v2233, %v2235
      %v2237 = vadd.f32 %v2233, %v2236
      %vm2238 = vweird.f32 %v2035
      %vm2239 = vweird.f32 %v2233
      %vm2240 = vmor %vm2238, %vm2239
      %v2241 = vsel %vm2240, %v2233, %v2237
      %v2242 = vand.u32 2147483647, %v2035
      %vm2243 = vcmp.eq.f32.partialorder %v2242, 8.507059e+37
      %v2244 = vand.u32 %v2035, 2147483648
      %v2245 = vor.u32 1.1754944e-38, %v2244
      %v2246 = vsel %vm2243, %v2245, %v2241
      %v2247 = vmul.f32 1.0, %v2246
      %v2248 = vrcp.pop %v2036
      %v2249 = vmul.f32 %v2036, %v2248
      %v2250 = vsub.f32 1.0, %v2249
      %v2251 = vmul.f32 %v2248, %v2250
      %v2252 = vadd.f32 %v2248, %v2251
      %vm2253 = vweird.f32 %v2036
      %vm2254 = vweird.f32 %v2248
      %vm2255 = vmor %vm2253, %vm2254
      %v2256 = vsel %vm2255, %v2248, %v2252
      %v2257 = vand.u32 2147483647, %v2036
      %vm2258 = vcmp.eq.f32.partialorder %v2257, 8.507059e+37
      %v2259 = vand.u32 %v2036, 2147483648
      %v2260 = vor.u32 1.1754944e-38, %v2259
      %v2261 = vsel %vm2258, %v2260, %v2256
      %v2262 = vmul.f32 1.0, %v2261
      %v2263 = vrcp.pop %v2037
      %v2264 = vmul.f32 %v2037, %v2263
      %v2265 = vsub.f32 1.0, %v2264
      %v2266 = vmul.f32 %v2263, %v2265
      %v2267 = vadd.f32 %v2263, %v2266
      %vm2268 = vweird.f32 %v2037
      %vm2269 = vweird.f32 %v2263
      %vm2270 = vmor %vm2268, %vm2269
      %v2271 = vsel %vm2270, %v2263, %v2267
      %v2272 = vand.u32 2147483647, %v2037
      %vm2273 = vcmp.eq.f32.partialorder %v2272, 8.507059e+37
      %v2274 = vand.u32 %v2037, 2147483648
      %v2275 = vor.u32 1.1754944e-38, %v2274
      %v2276 = vsel %vm2273, %v2275, %v2271
      %v2277 = vmul.f32 1.0, %v2276
      %2279 = vset.pattern.permute.xlu0 0
      %2280 = vperm.xlu0 %2279, %v1012
      %v2281 = vpop.permute.xlu0 %2280
      %2284 = vset.pattern.permute.xlu0 0
      %2285 = vperm.xlu0 %2284, %v1027
      %v2286 = vpop.permute.xlu0 %2285
      %2289 = vset.pattern.permute.xlu0 0
      %2290 = vperm.xlu0 %2289, %v1042
      %v2291 = vpop.permute.xlu0 %2290
      %2294 = vset.pattern.permute.xlu0 0
      %2295 = vperm.xlu0 %2294, %v1057
      %v2296 = vpop.permute.xlu0 %2295
      %2299 = vset.pattern.permute.xlu0 0
      %2300 = vperm.xlu0 %2299, %v1072
      %v2301 = vpop.permute.xlu0 %2300
      %2304 = vset.pattern.permute.xlu0 0
      %2305 = vperm.xlu0 %2304, %v1087
      %v2306 = vpop.permute.xlu0 %2305
      %2309 = vset.pattern.permute.xlu0 0
      %2310 = vperm.xlu0 %2309, %v1102
      %v2311 = vpop.permute.xlu0 %2310
      %2314 = vset.pattern.permute.xlu0 0
      %2315 = vperm.xlu0 %2314, %v1117
      %v2316 = vpop.permute.xlu0 %2315
      %2319 = vset.pattern.permute.xlu0 0
      %2320 = vperm.xlu0 %2319, %v1132
      %v2321 = vpop.permute.xlu0 %2320
      %2324 = vset.pattern.permute.xlu0 0
      %2325 = vperm.xlu0 %2324, %v1147
      %v2326 = vpop.permute.xlu0 %2325
      %2329 = vset.pattern.permute.xlu0 0
      %2330 = vperm.xlu0 %2329, %v1162
      %v2331 = vpop.permute.xlu0 %2330
      %2334 = vset.pattern.permute.xlu0 0
      %2335 = vperm.xlu0 %2334, %v1177
      %v2336 = vpop.permute.xlu0 %2335
      %2339 = vset.pattern.permute.xlu0 0
      %2340 = vperm.xlu0 %2339, %v1192
      %v2341 = vpop.permute.xlu0 %2340
      %2344 = vset.pattern.permute.xlu0 0
      %2345 = vperm.xlu0 %2344, %v1207
      %v2346 = vpop.permute.xlu0 %2345
      %2349 = vset.pattern.permute.xlu0 0
      %2350 = vperm.xlu0 %2349, %v1222
      %v2351 = vpop.permute.xlu0 %2350
      %2354 = vset.pattern.permute.xlu0 0
      %2355 = vperm.xlu0 %2354, %v1237
      %v2356 = vpop.permute.xlu0 %2355
      %v2358 = vmul.f32 %v2281, %v527
      %v2359 = vmul.f32 %v2286, %v530
      %v2360 = vmul.f32 %v2291, %v533
      %v2361 = vmul.f32 %v2296, %v536
      %v2362 = vmul.f32 %v2301, %v539
      %v2363 = vmul.f32 %v2306, %v542
      %v2364 = vmul.f32 %v2311, %v545
      %v2365 = vmul.f32 %v2316, %v548
      %v2366 = vmul.f32 %v2321, %v551
      %v2367 = vmul.f32 %v2326, %v554
      %v2368 = vmul.f32 %v2331, %v557
      %v2369 = vmul.f32 %v2336, %v560
      %v2370 = vmul.f32 %v2341, %v563
      %v2371 = vmul.f32 %v2346, %v566
      %v2372 = vmul.f32 %v2351, %v569
      %v2373 = vmul.f32 %v2356, %v572
      %2375 = vset.pattern.permute.xlu0 0
      %2376 = vperm.xlu0 %2375, %v1396
      %v2377 = vpop.permute.xlu0 %2376
      %2380 = vset.pattern.permute.xlu0 0
      %2381 = vperm.xlu0 %2380, %v1411
      %v2382 = vpop.permute.xlu0 %2381
      %2385 = vset.pattern.permute.xlu0 0
      %2386 = vperm.xlu0 %2385, %v1426
      %v2387 = vpop.permute.xlu0 %2386
      %2390 = vset.pattern.permute.xlu0 0
      %2391 = vperm.xlu0 %2390, %v1441
      %v2392 = vpop.permute.xlu0 %2391
      %2395 = vset.pattern.permute.xlu0 0
      %2396 = vperm.xlu0 %2395, %v1456
      %v2397 = vpop.permute.xlu0 %2396
      %2400 = vset.pattern.permute.xlu0 0
      %2401 = vperm.xlu0 %2400, %v1471
      %v2402 = vpop.permute.xlu0 %2401
      %2405 = vset.pattern.permute.xlu0 0
      %2406 = vperm.xlu0 %2405, %v1486
      %v2407 = vpop.permute.xlu0 %2406
      %2410 = vset.pattern.permute.xlu0 0
      %2411 = vperm.xlu0 %2410, %v1501
      %v2412 = vpop.permute.xlu0 %2411
      %2415 = vset.pattern.permute.xlu0 0
      %2416 = vperm.xlu0 %2415, %v1516
      %v2417 = vpop.permute.xlu0 %2416
      %2420 = vset.pattern.permute.xlu0 0
      %2421 = vperm.xlu0 %2420, %v1531
      %v2422 = vpop.permute.xlu0 %2421
      %2425 = vset.pattern.permute.xlu0 0
      %2426 = vperm.xlu0 %2425, %v1546
      %v2427 = vpop.permute.xlu0 %2426
      %2430 = vset.pattern.permute.xlu0 0
      %2431 = vperm.xlu0 %2430, %v1561
      %v2432 = vpop.permute.xlu0 %2431
      %2435 = vset.pattern.permute.xlu0 0
      %2436 = vperm.xlu0 %2435, %v1576
      %v2437 = vpop.permute.xlu0 %2436
      %2440 = vset.pattern.permute.xlu0 0
      %2441 = vperm.xlu0 %2440, %v1591
      %v2442 = vpop.permute.xlu0 %2441
      %2445 = vset.pattern.permute.xlu0 0
      %2446 = vperm.xlu0 %2445, %v1606
      %v2447 = vpop.permute.xlu0 %2446
      %2450 = vset.pattern.permute.xlu0 0
      %2451 = vperm.xlu0 %2450, %v1621
      %v2452 = vpop.permute.xlu0 %2451
      %v2454 = vmul.f32 %v2377, %v663
      %v2455 = vmul.f32 %v2382, %v666
      %v2456 = vmul.f32 %v2387, %v669
      %v2457 = vmul.f32 %v2392, %v672
      %v2458 = vmul.f32 %v2397, %v675
      %v2459 = vmul.f32 %v2402, %v678
      %v2460 = vmul.f32 %v2407, %v681
      %v2461 = vmul.f32 %v2412, %v684
      %v2462 = vmul.f32 %v2417, %v687
      %v2463 = vmul.f32 %v2422, %v690
      %v2464 = vmul.f32 %v2427, %v693
      %v2465 = vmul.f32 %v2432, %v696
      %v2466 = vmul.f32 %v2437, %v699
      %v2467 = vmul.f32 %v2442, %v702
      %v2468 = vmul.f32 %v2447, %v705
      %v2469 = vmul.f32 %v2452, %v708
      %v2470 = vadd.f32 %v2358, %v2454
      %v2471 = vadd.f32 %v2359, %v2455
      %v2472 = vadd.f32 %v2360, %v2456
      %v2473 = vadd.f32 %v2361, %v2457
      %v2474 = vadd.f32 %v2362, %v2458
      %v2475 = vadd.f32 %v2363, %v2459
      %v2476 = vadd.f32 %v2364, %v2460
      %v2477 = vadd.f32 %v2365, %v2461
      %v2478 = vadd.f32 %v2366, %v2462
      %v2479 = vadd.f32 %v2367, %v2463
      %v2480 = vadd.f32 %v2368, %v2464
      %v2481 = vadd.f32 %v2369, %v2465
      %v2482 = vadd.f32 %v2370, %v2466
      %v2483 = vadd.f32 %v2371, %v2467
      %v2484 = vadd.f32 %v2372, %v2468
      %v2485 = vadd.f32 %v2373, %v2469
      %2487 = vset.pattern.permute.xlu0 0
      %2488 = vperm.xlu0 %2487, %v1780
      %v2489 = vpop.permute.xlu0 %2488
      %2492 = vset.pattern.permute.xlu0 0
      %2493 = vperm.xlu0 %2492, %v1795
      %v2494 = vpop.permute.xlu0 %2493
      %2497 = vset.pattern.permute.xlu0 0
      %2498 = vperm.xlu0 %2497, %v1810
      %v2499 = vpop.permute.xlu0 %2498
      %2502 = vset.pattern.permute.xlu0 0
      %2503 = vperm.xlu0 %2502, %v1825
      %v2504 = vpop.permute.xlu0 %2503
      %2507 = vset.pattern.permute.xlu0 0
      %2508 = vperm.xlu0 %2507, %v1840
      %v2509 = vpop.permute.xlu0 %2508
      %2512 = vset.pattern.permute.xlu0 0
      %2513 = vperm.xlu0 %2512, %v1855
      %v2514 = vpop.permute.xlu0 %2513
      %2517 = vset.pattern.permute.xlu0 0
      %2518 = vperm.xlu0 %2517, %v1870
      %v2519 = vpop.permute.xlu0 %2518
      %2522 = vset.pattern.permute.xlu0 0
      %2523 = vperm.xlu0 %2522, %v1885
      %v2524 = vpop.permute.xlu0 %2523
      %2527 = vset.pattern.permute.xlu0 0
      %2528 = vperm.xlu0 %2527, %v1900
      %v2529 = vpop.permute.xlu0 %2528
      %2532 = vset.pattern.permute.xlu0 0
      %2533 = vperm.xlu0 %2532, %v1915
      %v2534 = vpop.permute.xlu0 %2533
      %2537 = vset.pattern.permute.xlu0 0
      %2538 = vperm.xlu0 %2537, %v1930
      %v2539 = vpop.permute.xlu0 %2538
      %2542 = vset.pattern.permute.xlu0 0
      %2543 = vperm.xlu0 %2542, %v1945
      %v2544 = vpop.permute.xlu0 %2543
      %2547 = vset.pattern.permute.xlu0 0
      %2548 = vperm.xlu0 %2547, %v1960
      %v2549 = vpop.permute.xlu0 %2548
      %2552 = vset.pattern.permute.xlu0 0
      %2553 = vperm.xlu0 %2552, %v1975
      %v2554 = vpop.permute.xlu0 %2553
      %2557 = vset.pattern.permute.xlu0 0
      %2558 = vperm.xlu0 %2557, %v1990
      %v2559 = vpop.permute.xlu0 %2558
      %2562 = vset.pattern.permute.xlu0 0
      %2563 = vperm.xlu0 %2562, %v2005
      %v2564 = vpop.permute.xlu0 %2563
      %v2566 = vmul.f32 %v2489, %v830
      %v2567 = vmul.f32 %v2494, %v831
      %v2568 = vmul.f32 %v2499, %v832
      %v2569 = vmul.f32 %v2504, %v833
      %v2570 = vmul.f32 %v2509, %v834
      %v2571 = vmul.f32 %v2514, %v835
      %v2572 = vmul.f32 %v2519, %v836
      %v2573 = vmul.f32 %v2524, %v837
      %v2574 = vmul.f32 %v2529, %v838
      %v2575 = vmul.f32 %v2534, %v839
      %v2576 = vmul.f32 %v2539, %v840
      %v2577 = vmul.f32 %v2544, %v841
      %v2578 = vmul.f32 %v2549, %v842
      %v2579 = vmul.f32 %v2554, %v843
      %v2580 = vmul.f32 %v2559, %v844
      %v2581 = vmul.f32 %v2564, %v845
      %v2582 = vadd.f32 %v2470, %v2566
      %v2583 = vadd.f32 %v2471, %v2567
      %v2584 = vadd.f32 %v2472, %v2568
      %v2585 = vadd.f32 %v2473, %v2569
      %v2586 = vadd.f32 %v2474, %v2570
      %v2587 = vadd.f32 %v2475, %v2571
      %v2588 = vadd.f32 %v2476, %v2572
      %v2589 = vadd.f32 %v2477, %v2573
      %v2590 = vadd.f32 %v2478, %v2574
      %v2591 = vadd.f32 %v2479, %v2575
      %v2592 = vadd.f32 %v2480, %v2576
      %v2593 = vadd.f32 %v2481, %v2577
      %v2594 = vadd.f32 %v2482, %v2578
      %v2595 = vadd.f32 %v2483, %v2579
      %v2596 = vadd.f32 %v2484, %v2580
      %v2597 = vadd.f32 %v2485, %v2581
      %2599 = vset.pattern.permute.xlu0 0
      %2600 = vperm.xlu0 %2599, %v2052
      %v2601 = vpop.permute.xlu0 %2600
      %2604 = vset.pattern.permute.xlu0 0
      %2605 = vperm.xlu0 %2604, %v2067
      %v2606 = vpop.permute.xlu0 %2605
      %2609 = vset.pattern.permute.xlu0 0
      %2610 = vperm.xlu0 %2609, %v2082
      %v2611 = vpop.permute.xlu0 %2610
      %2614 = vset.pattern.permute.xlu0 0
      %2615 = vperm.xlu0 %2614, %v2097
      %v2616 = vpop.permute.xlu0 %2615
      %2619 = vset.pattern.permute.xlu0 0
      %2620 = vperm.xlu0 %2619, %v2112
      %v2621 = vpop.permute.xlu0 %2620
      %2624 = vset.pattern.permute.xlu0 0
      %2625 = vperm.xlu0 %2624, %v2127
      %v2626 = vpop.permute.xlu0 %2625
      %2629 = vset.pattern.permute.xlu0 0
      %2630 = vperm.xlu0 %2629, %v2142
      %v2631 = vpop.permute.xlu0 %2630
      %2634 = vset.pattern.permute.xlu0 0
      %2635 = vperm.xlu0 %2634, %v2157
      %v2636 = vpop.permute.xlu0 %2635
      %2639 = vset.pattern.permute.xlu0 0
      %2640 = vperm.xlu0 %2639, %v2172
      %v2641 = vpop.permute.xlu0 %2640
      %2644 = vset.pattern.permute.xlu0 0
      %2645 = vperm.xlu0 %2644, %v2187
      %v2646 = vpop.permute.xlu0 %2645
      %2649 = vset.pattern.permute.xlu0 0
      %2650 = vperm.xlu0 %2649, %v2202
      %v2651 = vpop.permute.xlu0 %2650
      %2654 = vset.pattern.permute.xlu0 0
      %2655 = vperm.xlu0 %2654, %v2217
      %v2656 = vpop.permute.xlu0 %2655
      %2659 = vset.pattern.permute.xlu0 0
      %2660 = vperm.xlu0 %2659, %v2232
      %v2661 = vpop.permute.xlu0 %2660
      %2664 = vset.pattern.permute.xlu0 0
      %2665 = vperm.xlu0 %2664, %v2247
      %v2666 = vpop.permute.xlu0 %2665
      %2669 = vset.pattern.permute.xlu0 0
      %2670 = vperm.xlu0 %2669, %v2262
      %v2671 = vpop.permute.xlu0 %2670
      %2674 = vset.pattern.permute.xlu0 0
      %2675 = vperm.xlu0 %2674, %v2277
      %v2676 = vpop.permute.xlu0 %2675
      %v2678 = vmul.f32 %v2582, %v2601
      %v2679 = vmul.f32 %v2583, %v2606
      %v2680 = vmul.f32 %v2584, %v2611
      %v2681 = vmul.f32 %v2585, %v2616
      %v2682 = vmul.f32 %v2586, %v2621
      %v2683 = vmul.f32 %v2587, %v2626
      %v2684 = vmul.f32 %v2588, %v2631
      %v2685 = vmul.f32 %v2589, %v2636
      %v2686 = vmul.f32 %v2590, %v2641
      %v2687 = vmul.f32 %v2591, %v2646
      %v2688 = vmul.f32 %v2592, %v2651
      %v2689 = vmul.f32 %v2593, %v2656
      %v2690 = vmul.f32 %v2594, %v2661
      %v2691 = vmul.f32 %v2595, %v2666
      %v2692 = vmul.f32 %v2596, %v2671
      %v2693 = vmul.f32 %v2597, %v2676
      %2694 = vst.msk [vmem:[%s434] sm:$0xff] %vm460, %v2678
      %2695 = vst.msk [vmem:[%s434 + $0x8] sm:$0xff] %vm460, %v2679
      %2696 = vst.msk [vmem:[%s434 + $0x10] sm:$0xff] %vm460, %v2680
      %2697 = vst.msk [vmem:[%s434 + $0x18] sm:$0xff] %vm460, %v2681
      %2698 = vst.msk [vmem:[%s434 + $0x20] sm:$0xff] %vm460, %v2682
      %2699 = vst.msk [vmem:[%s434 + $0x28] sm:$0xff] %vm460, %v2683
      %2700 = vst.msk [vmem:[%s434 + $0x30] sm:$0xff] %vm460, %v2684
      %2701 = vst.msk [vmem:[%s434 + $0x38] sm:$0xff] %vm460, %v2685
      %2702 = vst.msk [vmem:[%s434 + $0x40] sm:$0xff] %vm460, %v2686
      %2703 = vst.msk [vmem:[%s434 + $0x48] sm:$0xff] %vm460, %v2687
      %2704 = vst.msk [vmem:[%s434 + $0x50] sm:$0xff] %vm460, %v2688
      %2705 = vst.msk [vmem:[%s434 + $0x58] sm:$0xff] %vm460, %v2689
      %2706 = vst.msk [vmem:[%s434 + $0x60] sm:$0xff] %vm460, %v2690
      %2707 = vst.msk [vmem:[%s434 + $0x68] sm:$0xff] %vm460, %v2691
      %2708 = vst.msk [vmem:[%s434 + $0x70] sm:$0xff] %vm460, %v2692
      %2709 = vst.msk [vmem:[%s434 + $0x78] sm:$0xff] %vm460, %v2693
      %s2710 = smul.u32 16, %s24
      %p2711 = scmp.lt.s32.totalorder %s2710, 31
      %s2712 = scalar_select %p2711, %s2710, 31
      %s2713 = smul.addr %s2712, 8
      %s2714 = scalar_lea.vmem %s11, %s2713
      // Predicated region
      $region65: #{tpu_custom_call.1} parent=63 // pred_check
        %p2715 = pneg %p288
      $region66: #{tpu_custom_call.1} parent=63 // pred_check_branch
        %2717 = sbr.rel (%p2715) target = $region68
      $region67: #{tpu_custom_call.1} parent=63 // pred_region
        %s2718 = smul.u32 16, %s24
      $region68: #{tpu_custom_call.1} parent=63 // pred_fallthru
        _
    $region64: #{tpu_custom_call.1} parent=5 // pred_fallthru
      _
    %p2719 = scmp.le.s32.totalorder 2, %s19
    // Predicated region
    $region69: #{tpu_custom_call.1} parent=5 // pred_check
      %p2720 = pneg %p2719
    $region70: #{tpu_custom_call.1} parent=5 // pred_check_branch
      %2722 = sbr.rel (%p2720) target = $region72
    $region71: #{tpu_custom_call.1} parent=5 // pred_region
      %s2723 = ssub.s32 %s19, 2
      // Predicated region
      $region73: #{tpu_custom_call.1} parent=71 // pred_check
        %p2724 = pneg %p294
      $region74: #{tpu_custom_call.1} parent=71 // pred_check_branch
        %2726 = sbr.rel (%p2724) target = $region76
      $region75: #{tpu_custom_call.1} parent=71 // pred_region
        %s2727 = smul.u32 16, %s25
        %p2728 = scmp.lt.s32.totalorder %s2727, 31
        %s2729 = scalar_select %p2728, %s2727, 31
        %s2730 = smul.addr %s2729, 8
        %s2731 = scalar_lea.vmem %s11, %s2730
      $region76: #{tpu_custom_call.1} parent=71 // pred_fallthru
        _
    $region72: #{tpu_custom_call.1} parent=5 // pred_fallthru
      _
  $region6: #{tpu_custom_call.1} parent=0 // loop_footer
    %s23 = sadd.s32 1, %s19
  $region7: #{tpu_custom_call.1} parent=0 // loop_footer_branch
    %18 = sbr.rel target = $region3
  $region8: #{tpu_custom_call.1} parent=0 // loop_exit
    _

</llo_original>
